<compile_context>
chip_gen: v6e
topology: v6e:2x2x1
jax: 0.10.0
libtpu: 0.0.40
codegen_flags: <defaults>
</compile_context>

<pallas_src>
import functools

import numpy as np
import jax
import jax.numpy as jnp
from jax.experimental import pallas as pl
from jax.experimental.pallas import tpu as pltpu

INPUT_SIZE = 3                               # Lorenz system -> 3 state variables
RESERVOIR_SIZE = 32
SPECTRAL_RADIUS = 0.9
ALPHA = 0.3
IN_DIM = 1 + INPUT_SIZE                      # ESN input vector length
CAT_DIM = IN_DIM + RESERVOIR_SIZE            # readout input length


def esn_seq_kernel(xs_ref, h0_ref, win_t_ref, wres_t_ref,
                   hs_ref, h_final_ref, pre_sc):
    """Fused T-step ESN recurrence for one batch block.

    xs_ref     : (T, Bb, IN_DIM)  driven inputs for this batch block
    h0_ref     : (Bb, R)          initial reservoir state
    win_t_ref  : (IN_DIM, R)      InRs.weight^T
    wres_t_ref : (R, R)           RsRs.weight^T
    hs_ref     : (T, Bb, R)       OUT: reservoir state after every step (lane-dense)
    h_final_ref: (Bb, R)          OUT: final reservoir state
    pre_sc     : (T*Bb, R)        VMEM scratch: hoisted input projection
    """
    T, Bb, in_dim = xs_ref.shape

    # ---- Prologue (no recurrence): project ALL T inputs in one dense matmul.
    xs_flat = xs_ref[...].reshape(T * Bb, in_dim)          # layout-preserving collapse
    pre_sc[...] = jnp.dot(xs_flat, win_t_ref[...],
                          preferred_element_type=jnp.float32)   # (T*Bb, R)

    # Hoist the (small) recurrent weight into registers once.
    wres_t = wres_t_ref[...]

    # ---- Serial recurrence: one MXU matmul + leaky tanh per step, nothing else.
    def step(t, h):
        row = pl.multiple_of(t * Bb, Bb)
        pre = pre_sc[pl.ds(row, Bb), :] + jnp.dot(
            h, wres_t, preferred_element_type=jnp.float32)
        h_new = h * (1.0 - ALPHA) + ALPHA * jnp.tanh(pre)
        hs_ref[t] = h_new                                   # VMEM write, lane width R
        return h_new

    unroll = T if T <= 16 else 8
    h_final = jax.lax.fori_loop(0, T, step, h0_ref[...], unroll=unroll)
    h_final_ref[...] = h_final


def _num_batch_blocks(batch: int) -> int:
    """1 grid block on single-TC chips (v5e/v6e); 2 parallel blocks on v7x."""
    try:
        kind = jax.devices()[0].device_kind.lower()
    except Exception:
        kind = ""
    n = 2 if "v7" in kind else 1
    if n > 1:
        blk = batch // n
        if batch % n != 0 or blk % 8 != 0:   # keep (8,128) block-shape rule happy
            n = 1
    return n


def prepare_params(w_in, w_res, w_out):
    """One-time weight preparation (transposes + readout split)."""
    win_t = jnp.asarray(w_in, jnp.float32).T       # (IN_DIM, R)
    wres_t = jnp.asarray(w_res, jnp.float32).T     # (R, R)
    wout_t = jnp.asarray(w_out, jnp.float32).T     # (CAT_DIM, O)
    woutx_t = wout_t[:IN_DIM]                      # (IN_DIM, O)
    wouth_t = wout_t[IN_DIM:]                      # (R, O)
    return win_t, wres_t, woutx_t, wouth_t


@functools.partial(jax.jit, static_argnums=(6,))
def _esn_sequence_impl(xs, h0, win_t, wres_t, woutx_t, wouth_t, n_blocks):
    T, B, in_dim = xs.shape
    R = wres_t.shape[0]
    O = wouth_t.shape[1]
    b_blk = B // n_blocks

    hs, h_final = pl.pallas_call(
        esn_seq_kernel,
        grid=(n_blocks,),
        in_specs=[
            pl.BlockSpec((T, b_blk, in_dim), lambda b: (0, b, 0)),
            pl.BlockSpec((b_blk, R), lambda b: (b, 0)),
            pl.BlockSpec((in_dim, R), lambda b: (0, 0)),
            pl.BlockSpec((R, R), lambda b: (0, 0)),
        ],
        out_specs=(
            pl.BlockSpec((T, b_blk, R), lambda b: (0, b, 0)),
            pl.BlockSpec((b_blk, R), lambda b: (b, 0)),
        ),
        out_shape=(jax.ShapeDtypeStruct((T, B, R), jnp.float32),
                   jax.ShapeDtypeStruct((B, R), jnp.float32)),
        scratch_shapes=[pltpu.VMEM((T * b_blk, R), jnp.float32)],
        compiler_params=pltpu.CompilerParams(
            dimension_semantics=("parallel",)),   # v7x: one block per TensorCore
    )(xs, h0, win_t, wres_t)

    # Readout has no recurrence: finish it as dense batched matmuls over all T
    # steps at once (outside the serial loop, fused into the same jit).
    hi = jax.lax.Precision.HIGHEST
    outs = (jnp.einsum('tbi,io->tbo', xs, woutx_t, precision=hi)
            + jnp.einsum('tbr,ro->tbo', hs, wouth_t, precision=hi))
    return outs, h_final


def esn_sequence(xs, h0, win_t, wres_t, woutx_t, wouth_t):
    """Run the ESN over a whole sequence.

    xs: (T, B, IN_DIM) driven inputs, h0: (B, R).
    Returns (outs (T, B, INPUT_SIZE), h_final (B, R)).
    """
    n_blocks = _num_batch_blocks(xs.shape[1])
    return _esn_sequence_impl(xs, h0, win_t, wres_t, woutx_t, wouth_t, n_blocks)


def init_weights(key):
    """Deterministic synthetic init mirroring ESN.init_weight() shapes/logic."""
    k1, k2, k3, k4, k5 = jax.random.split(key, 5)
    # InRs: uniform(-0.1, 0.1) with 5% sparsity mask
    w_in = jax.random.uniform(k1, (RESERVOIR_SIZE, IN_DIM),
                              minval=-0.1, maxval=0.1, dtype=jnp.float32)
    w_in = w_in * (jax.random.uniform(k2, w_in.shape) < 0.05).astype(jnp.float32)
    # RsRs: normal(std=0.1) with 5% sparsity, rescaled to spectral radius 0.9
    w_res = jax.random.normal(k3, (RESERVOIR_SIZE, RESERVOIR_SIZE),
                              dtype=jnp.float32) * 0.1
    w_res = w_res * (jax.random.uniform(k4, w_res.shape) < 0.05).astype(jnp.float32)
    # Spectral-radius rescale (torch.linalg.eigvals) is done on host with numpy:
    # it is weight *initialization*, not part of the forward pass / kernel.
    rho = float(np.max(np.abs(np.linalg.eigvals(np.asarray(w_res, dtype=np.float64)))))
    rho = max(rho, 1e-6)  # guard against all-zero sparse draw at tiny sizes
    w_res = w_res * (SPECTRAL_RADIUS / rho)
    # readout: standard normal
    w_out = jax.random.normal(k5, (INPUT_SIZE, CAT_DIM), dtype=jnp.float32)
    return w_in, w_res, w_out


def esn_reference_sequence(xs, h0, w_in, w_res, w_out):
    """Pure-JAX step-by-step reference (mirrors the stateful torch module)."""
    hi = jax.lax.Precision.HIGHEST

    def step(h, x):
        pre = (jnp.dot(x, w_in.T, precision=hi)
               + jnp.dot(h, w_res.T, precision=hi))
        h_new = h * (1.0 - ALPHA) + ALPHA * jnp.tanh(pre)
        out = jnp.dot(jnp.concatenate([x, h_new], axis=1), w_out.T, precision=hi)
        return h_new, out

    h_final, outs = jax.lax.scan(step, h0, xs)
    return outs, h_final


if __name__ == "__main__":
    T = 16       # sequence length
    B = 16       # independent ESN trajectories

    key = jax.random.PRNGKey(0)
    kx, kw = jax.random.split(key)

    w_in, w_res, w_out = init_weights(kw)
    win_t, wres_t, woutx_t, wouth_t = prepare_params(w_in, w_res, w_out)

    xs = jax.random.normal(kx, (T, B, IN_DIM), dtype=jnp.float32)
    h0 = jnp.zeros((B, RESERVOIR_SIZE), dtype=jnp.float32)   # module starts with h = 0

    outs, h_final = esn_sequence(xs, h0, win_t, wres_t, woutx_t, wouth_t)
    jax.block_until_ready((outs, h_final))

    # verify against plain-JAX step-by-step reference
    ref_outs, ref_h = esn_reference_sequence(xs, h0, w_in, w_res, w_out)
    np.testing.assert_allclose(np.asarray(outs), np.asarray(ref_outs),
                               rtol=1e-4, atol=1e-4)
    np.testing.assert_allclose(np.asarray(h_final), np.asarray(ref_h),
                               rtol=1e-4, atol=1e-4)

    print("KERNEL_OK")
</pallas_src>

<mosaic_0001>
module attributes {stable_mosaic.version = 11 : i64} {
  func.func @esn_seq_kernel(%arg0: i32, %arg1: memref<16x16x4xf32, #tpu.memory_space<vmem>>, %arg2: memref<16x32xf32, #tpu.memory_space<vmem>>, %arg3: memref<4x32xf32, #tpu.memory_space<vmem>>, %arg4: memref<32x32xf32, #tpu.memory_space<vmem>>, %arg5: memref<16x16x32xf32, #tpu.memory_space<vmem>>, %arg6: memref<16x32xf32, #tpu.memory_space<vmem>>, %arg7: memref<256x32xf32, #tpu.memory_space<vmem>>) attributes {dimension_semantics = [#tpu.dimension_semantics<parallel>], iteration_bounds = array<i64: 1>, scalar_prefetch = 0 : i64, scratch_operands = 1 : i64, tpu.core_type = #tpu.core_type<tc>, window_params = [{transform_indices = @transform_0, window_bounds = array<i64: 16, 16, 4>}, {transform_indices = @transform_1, window_bounds = array<i64: 16, 32>}, {pipeline_mode = #tpu.pipeline_mode<synchronous>, transform_indices = @transform_2, window_bounds = array<i64: 4, 32>}, {pipeline_mode = #tpu.pipeline_mode<synchronous>, transform_indices = @transform_3, window_bounds = array<i64: 32, 32>}, {transform_indices = @transform_4, window_bounds = array<i64: 16, 16, 32>}, {transform_indices = @transform_5, window_bounds = array<i64: 16, 32>}]} {
    %c0 = arith.constant 0 : index
    %c0_0 = arith.constant 0 : index
    %c0_1 = arith.constant 0 : index
    %0 = vector.load %arg1[%c0, %c0_0, %c0_1] : memref<16x16x4xf32, #tpu.memory_space<vmem>>, vector<16x16x4xf32>
    %1 = vector.shape_cast %0 : vector<16x16x4xf32> to vector<256x4xf32>
    %c0_2 = arith.constant 0 : index
    %c0_3 = arith.constant 0 : index
    %2 = vector.load %arg3[%c0_2, %c0_3] : memref<4x32xf32, #tpu.memory_space<vmem>>, vector<4x32xf32>
    %cst = arith.constant dense<0.000000e+00> : vector<256x32xf32>
    %3 = tpu.matmul %1, %2, %cst {dimension_numbers = #tpu.dot_dimension_numbers<[1], [0], [0], [1], [0, 0, 1, 1], [], []>} : vector<256x4xf32>, vector<4x32xf32>, vector<256x32xf32> -> vector<256x32xf32>
    %c0_4 = arith.constant 0 : index
    %c0_5 = arith.constant 0 : index
    %4 = vector.load %arg7[%c0_4, %c0_5] : memref<256x32xf32, #tpu.memory_space<vmem>>, vector<256x32xf32>
    tpu.vector_store %arg7[%c0_4, %c0_5], %3 {strides = array<i32>} : memref<256x32xf32, #tpu.memory_space<vmem>>, vector<256x32xf32>,
    %c0_6 = arith.constant 0 : index
    %c0_7 = arith.constant 0 : index
    %5 = vector.load %arg4[%c0_6, %c0_7] : memref<32x32xf32, #tpu.memory_space<vmem>>, vector<32x32xf32>
    %c0_8 = arith.constant 0 : index
    %c0_9 = arith.constant 0 : index
    %6 = vector.load %arg2[%c0_8, %c0_9] : memref<16x32xf32, #tpu.memory_space<vmem>>, vector<16x32xf32>
    %c0_i32 = arith.constant 0 : i32
    %c16_i32 = arith.constant 16 : i32
    %7 = arith.muli %c0_i32, %c16_i32 : i32
    %8 = tpu.assume_multiple %7, 16 : i32
    %9 = arith.index_cast %8 : i32 to index
    %c0_10 = arith.constant 0 : index
    %10 = vector.load %arg7[%9, %c0_10] : memref<256x32xf32, #tpu.memory_space<vmem>>, vector<16x32xf32>
    %cst_11 = arith.constant dense<0.000000e+00> : vector<16x32xf32>
    %11 = tpu.matmul %6, %5, %cst_11 {dimension_numbers = #tpu.dot_dimension_numbers<[1], [0], [0], [1], [0, 0, 1, 1], [], []>} : vector<16x32xf32>, vector<32x32xf32>, vector<16x32xf32> -> vector<16x32xf32>
    %12 = arith.addf %10, %11 : vector<16x32xf32>
    %cst_12 = arith.constant 0.699999988 : f32
    %13 = vector.broadcast %cst_12 : f32 to vector<16x32xf32>
    %14 = arith.mulf %6, %13 : vector<16x32xf32>
    %15 = math.tanh %12 : vector<16x32xf32>
    %cst_13 = arith.constant 3.000000e-01 : f32
    %16 = vector.broadcast %cst_13 : f32 to vector<16x32xf32>
    %17 = arith.mulf %16, %15 : vector<16x32xf32>
    %18 = arith.addf %14, %17 : vector<16x32xf32>
    %19 = arith.index_cast %c0_i32 : i32 to index
    %c0_14 = arith.constant 0 : index
    %c0_15 = arith.constant 0 : index
    %20 = vector.load %arg5[%19, %c0_14, %c0_15] : memref<16x16x32xf32, #tpu.memory_space<vmem>>, vector<1x16x32xf32>
    %21 = vector.shape_cast %20 : vector<1x16x32xf32> to vector<16x32xf32>
    %22 = vector.shape_cast %18 : vector<16x32xf32> to vector<1x16x32xf32>
    tpu.vector_store %arg5[%19, %c0_14, %c0_15], %22 {strides = array<i32>} : memref<16x16x32xf32, #tpu.memory_space<vmem>>, vector<1x16x32xf32>,
    %c1_i32 = arith.constant 1 : i32
    %c16_i32_16 = arith.constant 16 : i32
    %23 = arith.muli %c1_i32, %c16_i32_16 : i32
    %24 = tpu.assume_multiple %23, 16 : i32
    %25 = arith.index_cast %24 : i32 to index
    %c0_17 = arith.constant 0 : index
    %26 = vector.load %arg7[%25, %c0_17] : memref<256x32xf32, #tpu.memory_space<vmem>>, vector<16x32xf32>
    %cst_18 = arith.constant dense<0.000000e+00> : vector<16x32xf32>
    %27 = tpu.matmul %18, %5, %cst_18 {dimension_numbers = #tpu.dot_dimension_numbers<[1], [0], [0], [1], [0, 0, 1, 1], [], []>} : vector<16x32xf32>, vector<32x32xf32>, vector<16x32xf32> -> vector<16x32xf32>
    %28 = arith.addf %26, %27 : vector<16x32xf32>
    %cst_19 = arith.constant 0.699999988 : f32
    %29 = vector.broadcast %cst_19 : f32 to vector<16x32xf32>
    %30 = arith.mulf %18, %29 : vector<16x32xf32>
    %31 = math.tanh %28 : vector<16x32xf32>
    %cst_20 = arith.constant 3.000000e-01 : f32
    %32 = vector.broadcast %cst_20 : f32 to vector<16x32xf32>
    %33 = arith.mulf %32, %31 : vector<16x32xf32>
    %34 = arith.addf %30, %33 : vector<16x32xf32>
    %35 = arith.index_cast %c1_i32 : i32 to index
    %c0_21 = arith.constant 0 : index
    %c0_22 = arith.constant 0 : index
    %36 = vector.load %arg5[%35, %c0_21, %c0_22] : memref<16x16x32xf32, #tpu.memory_space<vmem>>, vector<1x16x32xf32>
    %37 = vector.shape_cast %36 : vector<1x16x32xf32> to vector<16x32xf32>
    %38 = vector.shape_cast %34 : vector<16x32xf32> to vector<1x16x32xf32>
    tpu.vector_store %arg5[%35, %c0_21, %c0_22], %38 {strides = array<i32>} : memref<16x16x32xf32, #tpu.memory_space<vmem>>, vector<1x16x32xf32>,
    %c2_i32 = arith.constant 2 : i32
    %c16_i32_23 = arith.constant 16 : i32
    %39 = arith.muli %c2_i32, %c16_i32_23 : i32
    %40 = tpu.assume_multiple %39, 16 : i32
    %41 = arith.index_cast %40 : i32 to index
    %c0_24 = arith.constant 0 : index
    %42 = vector.load %arg7[%41, %c0_24] : memref<256x32xf32, #tpu.memory_space<vmem>>, vector<16x32xf32>
    %cst_25 = arith.constant dense<0.000000e+00> : vector<16x32xf32>
    %43 = tpu.matmul %34, %5, %cst_25 {dimension_numbers = #tpu.dot_dimension_numbers<[1], [0], [0], [1], [0, 0, 1, 1], [], []>} : vector<16x32xf32>, vector<32x32xf32>, vector<16x32xf32> -> vector<16x32xf32>
    %44 = arith.addf %42, %43 : vector<16x32xf32>
    %cst_26 = arith.constant 0.699999988 : f32
    %45 = vector.broadcast %cst_26 : f32 to vector<16x32xf32>
    %46 = arith.mulf %34, %45 : vector<16x32xf32>
    %47 = math.tanh %44 : vector<16x32xf32>
    %cst_27 = arith.constant 3.000000e-01 : f32
    %48 = vector.broadcast %cst_27 : f32 to vector<16x32xf32>
    %49 = arith.mulf %48, %47 : vector<16x32xf32>
    %50 = arith.addf %46, %49 : vector<16x32xf32>
    %51 = arith.index_cast %c2_i32 : i32 to index
    %c0_28 = arith.constant 0 : index
    %c0_29 = arith.constant 0 : index
    %52 = vector.load %arg5[%51, %c0_28, %c0_29] : memref<16x16x32xf32, #tpu.memory_space<vmem>>, vector<1x16x32xf32>
    %53 = vector.shape_cast %52 : vector<1x16x32xf32> to vector<16x32xf32>
    %54 = vector.shape_cast %50 : vector<16x32xf32> to vector<1x16x32xf32>
    tpu.vector_store %arg5[%51, %c0_28, %c0_29], %54 {strides = array<i32>} : memref<16x16x32xf32, #tpu.memory_space<vmem>>, vector<1x16x32xf32>,
    %c3_i32 = arith.constant 3 : i32
    %c16_i32_30 = arith.constant 16 : i32
    %55 = arith.muli %c3_i32, %c16_i32_30 : i32
    %56 = tpu.assume_multiple %55, 16 : i32
    %57 = arith.index_cast %56 : i32 to index
    %c0_31 = arith.constant 0 : index
    %58 = vector.load %arg7[%57, %c0_31] : memref<256x32xf32, #tpu.memory_space<vmem>>, vector<16x32xf32>
    %cst_32 = arith.constant dense<0.000000e+00> : vector<16x32xf32>
    %59 = tpu.matmul %50, %5, %cst_32 {dimension_numbers = #tpu.dot_dimension_numbers<[1], [0], [0], [1], [0, 0, 1, 1], [], []>} : vector<16x32xf32>, vector<32x32xf32>, vector<16x32xf32> -> vector<16x32xf32>
    %60 = arith.addf %58, %59 : vector<16x32xf32>
    %cst_33 = arith.constant 0.699999988 : f32
    %61 = vector.broadcast %cst_33 : f32 to vector<16x32xf32>
    %62 = arith.mulf %50, %61 : vector<16x32xf32>
    %63 = math.tanh %60 : vector<16x32xf32>
    %cst_34 = arith.constant 3.000000e-01 : f32
    %64 = vector.broadcast %cst_34 : f32 to vector<16x32xf32>
    %65 = arith.mulf %64, %63 : vector<16x32xf32>
    %66 = arith.addf %62, %65 : vector<16x32xf32>
    %67 = arith.index_cast %c3_i32 : i32 to index
    %c0_35 = arith.constant 0 : index
    %c0_36 = arith.constant 0 : index
    %68 = vector.load %arg5[%67, %c0_35, %c0_36] : memref<16x16x32xf32, #tpu.memory_space<vmem>>, vector<1x16x32xf32>
    %69 = vector.shape_cast %68 : vector<1x16x32xf32> to vector<16x32xf32>
    %70 = vector.shape_cast %66 : vector<16x32xf32> to vector<1x16x32xf32>
    tpu.vector_store %arg5[%67, %c0_35, %c0_36], %70 {strides = array<i32>} : memref<16x16x32xf32, #tpu.memory_space<vmem>>, vector<1x16x32xf32>,
    %c4_i32 = arith.constant 4 : i32
    %c16_i32_37 = arith.constant 16 : i32
    %71 = arith.muli %c4_i32, %c16_i32_37 : i32
    %72 = tpu.assume_multiple %71, 16 : i32
    %73 = arith.index_cast %72 : i32 to index
    %c0_38 = arith.constant 0 : index
    %74 = vector.load %arg7[%73, %c0_38] : memref<256x32xf32, #tpu.memory_space<vmem>>, vector<16x32xf32>
    %cst_39 = arith.constant dense<0.000000e+00> : vector<16x32xf32>
    %75 = tpu.matmul %66, %5, %cst_39 {dimension_numbers = #tpu.dot_dimension_numbers<[1], [0], [0], [1], [0, 0, 1, 1], [], []>} : vector<16x32xf32>, vector<32x32xf32>, vector<16x32xf32> -> vector<16x32xf32>
    %76 = arith.addf %74, %75 : vector<16x32xf32>
    %cst_40 = arith.constant 0.699999988 : f32
    %77 = vector.broadcast %cst_40 : f32 to vector<16x32xf32>
    %78 = arith.mulf %66, %77 : vector<16x32xf32>
    %79 = math.tanh %76 : vector<16x32xf32>
    %cst_41 = arith.constant 3.000000e-01 : f32
    %80 = vector.broadcast %cst_41 : f32 to vector<16x32xf32>
    %81 = arith.mulf %80, %79 : vector<16x32xf32>
    %82 = arith.addf %78, %81 : vector<16x32xf32>
    %83 = arith.index_cast %c4_i32 : i32 to index
    %c0_42 = arith.constant 0 : index
    %c0_43 = arith.constant 0 : index
    %84 = vector.load %arg5[%83, %c0_42, %c0_43] : memref<16x16x32xf32, #tpu.memory_space<vmem>>, vector<1x16x32xf32>
    %85 = vector.shape_cast %84 : vector<1x16x32xf32> to vector<16x32xf32>
    %86 = vector.shape_cast %82 : vector<16x32xf32> to vector<1x16x32xf32>
    tpu.vector_store %arg5[%83, %c0_42, %c0_43], %86 {strides = array<i32>} : memref<16x16x32xf32, #tpu.memory_space<vmem>>, vector<1x16x32xf32>,
    %c5_i32 = arith.constant 5 : i32
    %c16_i32_44 = arith.constant 16 : i32
    %87 = arith.muli %c5_i32, %c16_i32_44 : i32
    %88 = tpu.assume_multiple %87, 16 : i32
    %89 = arith.index_cast %88 : i32 to index
    %c0_45 = arith.constant 0 : index
    %90 = vector.load %arg7[%89, %c0_45] : memref<256x32xf32, #tpu.memory_space<vmem>>, vector<16x32xf32>
    %cst_46 = arith.constant dense<0.000000e+00> : vector<16x32xf32>
    %91 = tpu.matmul %82, %5, %cst_46 {dimension_numbers = #tpu.dot_dimension_numbers<[1], [0], [0], [1], [0, 0, 1, 1], [], []>} : vector<16x32xf32>, vector<32x32xf32>, vector<16x32xf32> -> vector<16x32xf32>
    %92 = arith.addf %90, %91 : vector<16x32xf32>
    %cst_47 = arith.constant 0.699999988 : f32
    %93 = vector.broadcast %cst_47 : f32 to vector<16x32xf32>
    %94 = arith.mulf %82, %93 : vector<16x32xf32>
    %95 = math.tanh %92 : vector<16x32xf32>
    %cst_48 = arith.constant 3.000000e-01 : f32
    %96 = vector.broadcast %cst_48 : f32 to vector<16x32xf32>
    %97 = arith.mulf %96, %95 : vector<16x32xf32>
    %98 = arith.addf %94, %97 : vector<16x32xf32>
    %99 = arith.index_cast %c5_i32 : i32 to index
    %c0_49 = arith.constant 0 : index
    %c0_50 = arith.constant 0 : index
    %100 = vector.load %arg5[%99, %c0_49, %c0_50] : memref<16x16x32xf32, #tpu.memory_space<vmem>>, vector<1x16x32xf32>
    %101 = vector.shape_cast %100 : vector<1x16x32xf32> to vector<16x32xf32>
    %102 = vector.shape_cast %98 : vector<16x32xf32> to vector<1x16x32xf32>
    tpu.vector_store %arg5[%99, %c0_49, %c0_50], %102 {strides = array<i32>} : memref<16x16x32xf32, #tpu.memory_space<vmem>>, vector<1x16x32xf32>,
    %c6_i32 = arith.constant 6 : i32
    %c16_i32_51 = arith.constant 16 : i32
    %103 = arith.muli %c6_i32, %c16_i32_51 : i32
    %104 = tpu.assume_multiple %103, 16 : i32
    %105 = arith.index_cast %104 : i32 to index
    %c0_52 = arith.constant 0 : index
    %106 = vector.load %arg7[%105, %c0_52] : memref<256x32xf32, #tpu.memory_space<vmem>>, vector<16x32xf32>
    %cst_53 = arith.constant dense<0.000000e+00> : vector<16x32xf32>
    %107 = tpu.matmul %98, %5, %cst_53 {dimension_numbers = #tpu.dot_dimension_numbers<[1], [0], [0], [1], [0, 0, 1, 1], [], []>} : vector<16x32xf32>, vector<32x32xf32>, vector<16x32xf32> -> vector<16x32xf32>
    %108 = arith.addf %106, %107 : vector<16x32xf32>
    %cst_54 = arith.constant 0.699999988 : f32
    %109 = vector.broadcast %cst_54 : f32 to vector<16x32xf32>
    %110 = arith.mulf %98, %109 : vector<16x32xf32>
    %111 = math.tanh %108 : vector<16x32xf32>
    %cst_55 = arith.constant 3.000000e-01 : f32
    %112 = vector.broadcast %cst_55 : f32 to vector<16x32xf32>
    %113 = arith.mulf %112, %111 : vector<16x32xf32>
    %114 = arith.addf %110, %113 : vector<16x32xf32>
    %115 = arith.index_cast %c6_i32 : i32 to index
    %c0_56 = arith.constant 0 : index
    %c0_57 = arith.constant 0 : index
    %116 = vector.load %arg5[%115, %c0_56, %c0_57] : memref<16x16x32xf32, #tpu.memory_space<vmem>>, vector<1x16x32xf32>
    %117 = vector.shape_cast %116 : vector<1x16x32xf32> to vector<16x32xf32>
    %118 = vector.shape_cast %114 : vector<16x32xf32> to vector<1x16x32xf32>
    tpu.vector_store %arg5[%115, %c0_56, %c0_57], %118 {strides = array<i32>} : memref<16x16x32xf32, #tpu.memory_space<vmem>>, vector<1x16x32xf32>,
    %c7_i32 = arith.constant 7 : i32
    %c16_i32_58 = arith.constant 16 : i32
    %119 = arith.muli %c7_i32, %c16_i32_58 : i32
    %120 = tpu.assume_multiple %119, 16 : i32
    %121 = arith.index_cast %120 : i32 to index
    %c0_59 = arith.constant 0 : index
    %122 = vector.load %arg7[%121, %c0_59] : memref<256x32xf32, #tpu.memory_space<vmem>>, vector<16x32xf32>
    %cst_60 = arith.constant dense<0.000000e+00> : vector<16x32xf32>
    %123 = tpu.matmul %114, %5, %cst_60 {dimension_numbers = #tpu.dot_dimension_numbers<[1], [0], [0], [1], [0, 0, 1, 1], [], []>} : vector<16x32xf32>, vector<32x32xf32>, vector<16x32xf32> -> vector<16x32xf32>
    %124 = arith.addf %122, %123 : vector<16x32xf32>
    %cst_61 = arith.constant 0.699999988 : f32
    %125 = vector.broadcast %cst_61 : f32 to vector<16x32xf32>
    %126 = arith.mulf %114, %125 : vector<16x32xf32>
    %127 = math.tanh %124 : vector<16x32xf32>
    %cst_62 = arith.constant 3.000000e-01 : f32
    %128 = vector.broadcast %cst_62 : f32 to vector<16x32xf32>
    %129 = arith.mulf %128, %127 : vector<16x32xf32>
    %130 = arith.addf %126, %129 : vector<16x32xf32>
    %131 = arith.index_cast %c7_i32 : i32 to index
    %c0_63 = arith.constant 0 : index
    %c0_64 = arith.constant 0 : index
    %132 = vector.load %arg5[%131, %c0_63, %c0_64] : memref<16x16x32xf32, #tpu.memory_space<vmem>>, vector<1x16x32xf32>
    %133 = vector.shape_cast %132 : vector<1x16x32xf32> to vector<16x32xf32>
    %134 = vector.shape_cast %130 : vector<16x32xf32> to vector<1x16x32xf32>
    tpu.vector_store %arg5[%131, %c0_63, %c0_64], %134 {strides = array<i32>} : memref<16x16x32xf32, #tpu.memory_space<vmem>>, vector<1x16x32xf32>,
    %c8_i32 = arith.constant 8 : i32
    %c16_i32_65 = arith.constant 16 : i32
    %135 = arith.muli %c8_i32, %c16_i32_65 : i32
    %136 = tpu.assume_multiple %135, 16 : i32
    %137 = arith.index_cast %136 : i32 to index
    %c0_66 = arith.constant 0 : index
    %138 = vector.load %arg7[%137, %c0_66] : memref<256x32xf32, #tpu.memory_space<vmem>>, vector<16x32xf32>
    %cst_67 = arith.constant dense<0.000000e+00> : vector<16x32xf32>
    %139 = tpu.matmul %130, %5, %cst_67 {dimension_numbers = #tpu.dot_dimension_numbers<[1], [0], [0], [1], [0, 0, 1, 1], [], []>} : vector<16x32xf32>, vector<32x32xf32>, vector<16x32xf32> -> vector<16x32xf32>
    %140 = arith.addf %138, %139 : vector<16x32xf32>
    %cst_68 = arith.constant 0.699999988 : f32
    %141 = vector.broadcast %cst_68 : f32 to vector<16x32xf32>
    %142 = arith.mulf %130, %141 : vector<16x32xf32>
    %143 = math.tanh %140 : vector<16x32xf32>
    %cst_69 = arith.constant 3.000000e-01 : f32
    %144 = vector.broadcast %cst_69 : f32 to vector<16x32xf32>
    %145 = arith.mulf %144, %143 : vector<16x32xf32>
    %146 = arith.addf %142, %145 : vector<16x32xf32>
    %147 = arith.index_cast %c8_i32 : i32 to index
    %c0_70 = arith.constant 0 : index
    %c0_71 = arith.constant 0 : index
    %148 = vector.load %arg5[%147, %c0_70, %c0_71] : memref<16x16x32xf32, #tpu.memory_space<vmem>>, vector<1x16x32xf32>
    %149 = vector.shape_cast %148 : vector<1x16x32xf32> to vector<16x32xf32>
    %150 = vector.shape_cast %146 : vector<16x32xf32> to vector<1x16x32xf32>
    tpu.vector_store %arg5[%147, %c0_70, %c0_71], %150 {strides = array<i32>} : memref<16x16x32xf32, #tpu.memory_space<vmem>>, vector<1x16x32xf32>,
    %c9_i32 = arith.constant 9 : i32
    %c16_i32_72 = arith.constant 16 : i32
    %151 = arith.muli %c9_i32, %c16_i32_72 : i32
    %152 = tpu.assume_multiple %151, 16 : i32
    %153 = arith.index_cast %152 : i32 to index
    %c0_73 = arith.constant 0 : index
    %154 = vector.load %arg7[%153, %c0_73] : memref<256x32xf32, #tpu.memory_space<vmem>>, vector<16x32xf32>
    %cst_74 = arith.constant dense<0.000000e+00> : vector<16x32xf32>
    %155 = tpu.matmul %146, %5, %cst_74 {dimension_numbers = #tpu.dot_dimension_numbers<[1], [0], [0], [1], [0, 0, 1, 1], [], []>} : vector<16x32xf32>, vector<32x32xf32>, vector<16x32xf32> -> vector<16x32xf32>
    %156 = arith.addf %154, %155 : vector<16x32xf32>
    %cst_75 = arith.constant 0.699999988 : f32
    %157 = vector.broadcast %cst_75 : f32 to vector<16x32xf32>
    %158 = arith.mulf %146, %157 : vector<16x32xf32>
    %159 = math.tanh %156 : vector<16x32xf32>
    %cst_76 = arith.constant 3.000000e-01 : f32
    %160 = vector.broadcast %cst_76 : f32 to vector<16x32xf32>
    %161 = arith.mulf %160, %159 : vector<16x32xf32>
    %162 = arith.addf %158, %161 : vector<16x32xf32>
    %163 = arith.index_cast %c9_i32 : i32 to index
    %c0_77 = arith.constant 0 : index
    %c0_78 = arith.constant 0 : index
    %164 = vector.load %arg5[%163, %c0_77, %c0_78] : memref<16x16x32xf32, #tpu.memory_space<vmem>>, vector<1x16x32xf32>
    %165 = vector.shape_cast %164 : vector<1x16x32xf32> to vector<16x32xf32>
    %166 = vector.shape_cast %162 : vector<16x32xf32> to vector<1x16x32xf32>
    tpu.vector_store %arg5[%163, %c0_77, %c0_78], %166 {strides = array<i32>} : memref<16x16x32xf32, #tpu.memory_space<vmem>>, vector<1x16x32xf32>,
    %c10_i32 = arith.constant 10 : i32
    %c16_i32_79 = arith.constant 16 : i32
    %167 = arith.muli %c10_i32, %c16_i32_79 : i32
    %168 = tpu.assume_multiple %167, 16 : i32
    %169 = arith.index_cast %168 : i32 to index
    %c0_80 = arith.constant 0 : index
    %170 = vector.load %arg7[%169, %c0_80] : memref<256x32xf32, #tpu.memory_space<vmem>>, vector<16x32xf32>
    %cst_81 = arith.constant dense<0.000000e+00> : vector<16x32xf32>
    %171 = tpu.matmul %162, %5, %cst_81 {dimension_numbers = #tpu.dot_dimension_numbers<[1], [0], [0], [1], [0, 0, 1, 1], [], []>} : vector<16x32xf32>, vector<32x32xf32>, vector<16x32xf32> -> vector<16x32xf32>
    %172 = arith.addf %170, %171 : vector<16x32xf32>
    %cst_82 = arith.constant 0.699999988 : f32
    %173 = vector.broadcast %cst_82 : f32 to vector<16x32xf32>
    %174 = arith.mulf %162, %173 : vector<16x32xf32>
    %175 = math.tanh %172 : vector<16x32xf32>
    %cst_83 = arith.constant 3.000000e-01 : f32
    %176 = vector.broadcast %cst_83 : f32 to vector<16x32xf32>
    %177 = arith.mulf %176, %175 : vector<16x32xf32>
    %178 = arith.addf %174, %177 : vector<16x32xf32>
    %179 = arith.index_cast %c10_i32 : i32 to index
    %c0_84 = arith.constant 0 : index
    %c0_85 = arith.constant 0 : index
    %180 = vector.load %arg5[%179, %c0_84, %c0_85] : memref<16x16x32xf32, #tpu.memory_space<vmem>>, vector<1x16x32xf32>
    %181 = vector.shape_cast %180 : vector<1x16x32xf32> to vector<16x32xf32>
    %182 = vector.shape_cast %178 : vector<16x32xf32> to vector<1x16x32xf32>
    tpu.vector_store %arg5[%179, %c0_84, %c0_85], %182 {strides = array<i32>} : memref<16x16x32xf32, #tpu.memory_space<vmem>>, vector<1x16x32xf32>,
    %c11_i32 = arith.constant 11 : i32
    %c16_i32_86 = arith.constant 16 : i32
    %183 = arith.muli %c11_i32, %c16_i32_86 : i32
    %184 = tpu.assume_multiple %183, 16 : i32
    %185 = arith.index_cast %184 : i32 to index
    %c0_87 = arith.constant 0 : index
    %186 = vector.load %arg7[%185, %c0_87] : memref<256x32xf32, #tpu.memory_space<vmem>>, vector<16x32xf32>
    %cst_88 = arith.constant dense<0.000000e+00> : vector<16x32xf32>
    %187 = tpu.matmul %178, %5, %cst_88 {dimension_numbers = #tpu.dot_dimension_numbers<[1], [0], [0], [1], [0, 0, 1, 1], [], []>} : vector<16x32xf32>, vector<32x32xf32>, vector<16x32xf32> -> vector<16x32xf32>
    %188 = arith.addf %186, %187 : vector<16x32xf32>
    %cst_89 = arith.constant 0.699999988 : f32
    %189 = vector.broadcast %cst_89 : f32 to vector<16x32xf32>
    %190 = arith.mulf %178, %189 : vector<16x32xf32>
    %191 = math.tanh %188 : vector<16x32xf32>
    %cst_90 = arith.constant 3.000000e-01 : f32
    %192 = vector.broadcast %cst_90 : f32 to vector<16x32xf32>
    %193 = arith.mulf %192, %191 : vector<16x32xf32>
    %194 = arith.addf %190, %193 : vector<16x32xf32>
    %195 = arith.index_cast %c11_i32 : i32 to index
    %c0_91 = arith.constant 0 : index
    %c0_92 = arith.constant 0 : index
    %196 = vector.load %arg5[%195, %c0_91, %c0_92] : memref<16x16x32xf32, #tpu.memory_space<vmem>>, vector<1x16x32xf32>
    %197 = vector.shape_cast %196 : vector<1x16x32xf32> to vector<16x32xf32>
    %198 = vector.shape_cast %194 : vector<16x32xf32> to vector<1x16x32xf32>
    tpu.vector_store %arg5[%195, %c0_91, %c0_92], %198 {strides = array<i32>} : memref<16x16x32xf32, #tpu.memory_space<vmem>>, vector<1x16x32xf32>,
    %c12_i32 = arith.constant 12 : i32
    %c16_i32_93 = arith.constant 16 : i32
    %199 = arith.muli %c12_i32, %c16_i32_93 : i32
    %200 = tpu.assume_multiple %199, 16 : i32
    %201 = arith.index_cast %200 : i32 to index
    %c0_94 = arith.constant 0 : index
    %202 = vector.load %arg7[%201, %c0_94] : memref<256x32xf32, #tpu.memory_space<vmem>>, vector<16x32xf32>
    %cst_95 = arith.constant dense<0.000000e+00> : vector<16x32xf32>
    %203 = tpu.matmul %194, %5, %cst_95 {dimension_numbers = #tpu.dot_dimension_numbers<[1], [0], [0], [1], [0, 0, 1, 1], [], []>} : vector<16x32xf32>, vector<32x32xf32>, vector<16x32xf32> -> vector<16x32xf32>
    %204 = arith.addf %202, %203 : vector<16x32xf32>
    %cst_96 = arith.constant 0.699999988 : f32
    %205 = vector.broadcast %cst_96 : f32 to vector<16x32xf32>
    %206 = arith.mulf %194, %205 : vector<16x32xf32>
    %207 = math.tanh %204 : vector<16x32xf32>
    %cst_97 = arith.constant 3.000000e-01 : f32
    %208 = vector.broadcast %cst_97 : f32 to vector<16x32xf32>
    %209 = arith.mulf %208, %207 : vector<16x32xf32>
    %210 = arith.addf %206, %209 : vector<16x32xf32>
    %211 = arith.index_cast %c12_i32 : i32 to index
    %c0_98 = arith.constant 0 : index
    %c0_99 = arith.constant 0 : index
    %212 = vector.load %arg5[%211, %c0_98, %c0_99] : memref<16x16x32xf32, #tpu.memory_space<vmem>>, vector<1x16x32xf32>
    %213 = vector.shape_cast %212 : vector<1x16x32xf32> to vector<16x32xf32>
    %214 = vector.shape_cast %210 : vector<16x32xf32> to vector<1x16x32xf32>
    tpu.vector_store %arg5[%211, %c0_98, %c0_99], %214 {strides = array<i32>} : memref<16x16x32xf32, #tpu.memory_space<vmem>>, vector<1x16x32xf32>,
    %c13_i32 = arith.constant 13 : i32
    %c16_i32_100 = arith.constant 16 : i32
    %215 = arith.muli %c13_i32, %c16_i32_100 : i32
    %216 = tpu.assume_multiple %215, 16 : i32
    %217 = arith.index_cast %216 : i32 to index
    %c0_101 = arith.constant 0 : index
    %218 = vector.load %arg7[%217, %c0_101] : memref<256x32xf32, #tpu.memory_space<vmem>>, vector<16x32xf32>
    %cst_102 = arith.constant dense<0.000000e+00> : vector<16x32xf32>
    %219 = tpu.matmul %210, %5, %cst_102 {dimension_numbers = #tpu.dot_dimension_numbers<[1], [0], [0], [1], [0, 0, 1, 1], [], []>} : vector<16x32xf32>, vector<32x32xf32>, vector<16x32xf32> -> vector<16x32xf32>
    %220 = arith.addf %218, %219 : vector<16x32xf32>
    %cst_103 = arith.constant 0.699999988 : f32
    %221 = vector.broadcast %cst_103 : f32 to vector<16x32xf32>
    %222 = arith.mulf %210, %221 : vector<16x32xf32>
    %223 = math.tanh %220 : vector<16x32xf32>
    %cst_104 = arith.constant 3.000000e-01 : f32
    %224 = vector.broadcast %cst_104 : f32 to vector<16x32xf32>
    %225 = arith.mulf %224, %223 : vector<16x32xf32>
    %226 = arith.addf %222, %225 : vector<16x32xf32>
    %227 = arith.index_cast %c13_i32 : i32 to index
    %c0_105 = arith.constant 0 : index
    %c0_106 = arith.constant 0 : index
    %228 = vector.load %arg5[%227, %c0_105, %c0_106] : memref<16x16x32xf32, #tpu.memory_space<vmem>>, vector<1x16x32xf32>
    %229 = vector.shape_cast %228 : vector<1x16x32xf32> to vector<16x32xf32>
    %230 = vector.shape_cast %226 : vector<16x32xf32> to vector<1x16x32xf32>
    tpu.vector_store %arg5[%227, %c0_105, %c0_106], %230 {strides = array<i32>} : memref<16x16x32xf32, #tpu.memory_space<vmem>>, vector<1x16x32xf32>,
    %c14_i32 = arith.constant 14 : i32
    %c16_i32_107 = arith.constant 16 : i32
    %231 = arith.muli %c14_i32, %c16_i32_107 : i32
    %232 = tpu.assume_multiple %231, 16 : i32
    %233 = arith.index_cast %232 : i32 to index
    %c0_108 = arith.constant 0 : index
    %234 = vector.load %arg7[%233, %c0_108] : memref<256x32xf32, #tpu.memory_space<vmem>>, vector<16x32xf32>
    %cst_109 = arith.constant dense<0.000000e+00> : vector<16x32xf32>
    %235 = tpu.matmul %226, %5, %cst_109 {dimension_numbers = #tpu.dot_dimension_numbers<[1], [0], [0], [1], [0, 0, 1, 1], [], []>} : vector<16x32xf32>, vector<32x32xf32>, vector<16x32xf32> -> vector<16x32xf32>
    %236 = arith.addf %234, %235 : vector<16x32xf32>
    %cst_110 = arith.constant 0.699999988 : f32
    %237 = vector.broadcast %cst_110 : f32 to vector<16x32xf32>
    %238 = arith.mulf %226, %237 : vector<16x32xf32>
    %239 = math.tanh %236 : vector<16x32xf32>
    %cst_111 = arith.constant 3.000000e-01 : f32
    %240 = vector.broadcast %cst_111 : f32 to vector<16x32xf32>
    %241 = arith.mulf %240, %239 : vector<16x32xf32>
    %242 = arith.addf %238, %241 : vector<16x32xf32>
    %243 = arith.index_cast %c14_i32 : i32 to index
    %c0_112 = arith.constant 0 : index
    %c0_113 = arith.constant 0 : index
    %244 = vector.load %arg5[%243, %c0_112, %c0_113] : memref<16x16x32xf32, #tpu.memory_space<vmem>>, vector<1x16x32xf32>
    %245 = vector.shape_cast %244 : vector<1x16x32xf32> to vector<16x32xf32>
    %246 = vector.shape_cast %242 : vector<16x32xf32> to vector<1x16x32xf32>
    tpu.vector_store %arg5[%243, %c0_112, %c0_113], %246 {strides = array<i32>} : memref<16x16x32xf32, #tpu.memory_space<vmem>>, vector<1x16x32xf32>,
    %c15_i32 = arith.constant 15 : i32
    %c16_i32_114 = arith.constant 16 : i32
    %247 = arith.muli %c15_i32, %c16_i32_114 : i32
    %248 = tpu.assume_multiple %247, 16 : i32
    %249 = arith.index_cast %248 : i32 to index
    %c0_115 = arith.constant 0 : index
    %250 = vector.load %arg7[%249, %c0_115] : memref<256x32xf32, #tpu.memory_space<vmem>>, vector<16x32xf32>
    %cst_116 = arith.constant dense<0.000000e+00> : vector<16x32xf32>
    %251 = tpu.matmul %242, %5, %cst_116 {dimension_numbers = #tpu.dot_dimension_numbers<[1], [0], [0], [1], [0, 0, 1, 1], [], []>} : vector<16x32xf32>, vector<32x32xf32>, vector<16x32xf32> -> vector<16x32xf32>
    %252 = arith.addf %250, %251 : vector<16x32xf32>
    %cst_117 = arith.constant 0.699999988 : f32
    %253 = vector.broadcast %cst_117 : f32 to vector<16x32xf32>
    %254 = arith.mulf %242, %253 : vector<16x32xf32>
    %255 = math.tanh %252 : vector<16x32xf32>
    %cst_118 = arith.constant 3.000000e-01 : f32
    %256 = vector.broadcast %cst_118 : f32 to vector<16x32xf32>
    %257 = arith.mulf %256, %255 : vector<16x32xf32>
    %258 = arith.addf %254, %257 : vector<16x32xf32>
    %259 = arith.index_cast %c15_i32 : i32 to index
    %c0_119 = arith.constant 0 : index
    %c0_120 = arith.constant 0 : index
    %260 = vector.load %arg5[%259, %c0_119, %c0_120] : memref<16x16x32xf32, #tpu.memory_space<vmem>>, vector<1x16x32xf32>
    %261 = vector.shape_cast %260 : vector<1x16x32xf32> to vector<16x32xf32>
    %262 = vector.shape_cast %258 : vector<16x32xf32> to vector<1x16x32xf32>
    tpu.vector_store %arg5[%259, %c0_119, %c0_120], %262 {strides = array<i32>} : memref<16x16x32xf32, #tpu.memory_space<vmem>>, vector<1x16x32xf32>,
    %c16_i32_121 = arith.constant 16 : i32
    %c0_122 = arith.constant 0 : index
    %c0_123 = arith.constant 0 : index
    %263 = vector.load %arg6[%c0_122, %c0_123] : memref<16x32xf32, #tpu.memory_space<vmem>>, vector<16x32xf32>
    tpu.vector_store %arg6[%c0_122, %c0_123], %258 {strides = array<i32>} : memref<16x32xf32, #tpu.memory_space<vmem>>, vector<16x32xf32>,
    return
  }
  func.func @transform_0(%arg0: i32) -> (i32, i32, i32) {
    %c0_i32 = arith.constant 0 : i32
    %c0_i32_0 = arith.constant 0 : i32
    %c0_i32_1 = arith.constant 0 : i32
    return %c0_i32, %arg0, %c0_i32_0 : i32, i32, i32
  }
  func.func @transform_1(%arg0: i32) -> (i32, i32) {
    %c0_i32 = arith.constant 0 : i32
    %c0_i32_0 = arith.constant 0 : i32
    return %arg0, %c0_i32 : i32, i32
  }
  func.func @transform_2(%arg0: i32) -> (i32, i32) {
    %c0_i32 = arith.constant 0 : i32
    %c0_i32_0 = arith.constant 0 : i32
    %c0_i32_1 = arith.constant 0 : i32
    return %c0_i32, %c0_i32_0 : i32, i32
  }
  func.func @transform_3(%arg0: i32) -> (i32, i32) {
    %c0_i32 = arith.constant 0 : i32
    %c0_i32_0 = arith.constant 0 : i32
    %c0_i32_1 = arith.constant 0 : i32
    return %c0_i32, %c0_i32_0 : i32, i32
  }
  func.func @transform_4(%arg0: i32) -> (i32, i32, i32) {
    %c0_i32 = arith.constant 0 : i32
    %c0_i32_0 = arith.constant 0 : i32
    %c0_i32_1 = arith.constant 0 : i32
    return %c0_i32, %arg0, %c0_i32_0 : i32, i32, i32
  }
  func.func @transform_5(%arg0: i32) -> (i32, i32) {
    %c0_i32 = arith.constant 0 : i32
    %c0_i32_0 = arith.constant 0 : i32
    return %arg0, %c0_i32 : i32, i32
  }
}

</mosaic_0001>

<llo_original>
// kernel: _esn_sequence_impl.1
$region0: #{_esn_sequence_impl.1}
  #allocation0 [shape = 'u32[]', space=smem, size = 0x4, offset = 0x4, fixed_abs, tag = 'smem constant byte address 0x4 - core index']
  #allocation1 [shape = 'u32[144,128]{1,0:T(1,128)}', space=vmem, size = 0x12000, scoped, tag = 'internal scratch']
  #allocation2 [shape = 'f32[256,32]{1,0:T(8,128)}', space=vmem, size = 0x20000, scoped, tag = 'scratch operand']
  %s0 = inlined_call_operand.vmem [shape: f32[16,16,4], index: 0, kind: input, shape index: {}]
  %s1 = inlined_call_operand.vmem [shape: f32[16,32], index: 1, kind: input, shape index: {}]
  %s2 = inlined_call_operand.vmem [shape: f32[4,32], index: 2, kind: input, shape index: {}]
  %s3 = inlined_call_operand.vmem [shape: f32[32,32], index: 3, kind: input, shape index: {}]
  %s4 = inlined_call_operand.vmem [shape: f32[16,16,32], index: 4, kind: output, shape index: {0}]
  %s5 = inlined_call_operand.hbm [shape: f32[16,32], index: 5, kind: output, shape index: {1}]
  %6 = xla_tuple %s4, %s5
  %s7 = sld [smem:[#allocation0]]
  $region34: #{_esn_sequence_impl.1} parent=0
    _
  %s9 = ssub.s32 1, %s7
  %s10 = scalar_select 0, %s9, %s7
  $region1: #{_esn_sequence_impl.1} parent=0
    #allocation3 [shape = 'u8[8192]{0}', space=vmem, size = 0x2000, scoped, tag = 'output window, operand 1, single buffered']
    #allocation4 [shape = 's32[1]{0}', space=sflag, size = 0x4, scoped, tag = 'scoped memory for _esn_sequence_impl.1']
    %11 = vsyncpa [#allocation4], 0
    // Predicated region
    $region2: #{_esn_sequence_impl.1} parent=1 // pred_check
      _
    $region3: #{_esn_sequence_impl.1} parent=1 // pred_check_branch
      %13 = sbr.rel (0) target = $region5
    $region4: #{_esn_sequence_impl.1} parent=1 // pred_region
      _
    $region5: #{_esn_sequence_impl.1} parent=1 // pred_fallthru
      _
    // Predicated region
    $region6: #{_esn_sequence_impl.1} parent=1 // pred_check
      _
    $region7: #{_esn_sequence_impl.1} parent=1 // pred_check_branch
      %15 = sbr.rel (0) target = $region9
    $region8: #{_esn_sequence_impl.1} parent=1 // pred_region
      _
    $region9: #{_esn_sequence_impl.1} parent=1 // pred_fallthru
      _
    // Predicated region
    $region10: #{_esn_sequence_impl.1} parent=1 // pred_check
      _
    $region11: #{_esn_sequence_impl.1} parent=1 // pred_check_branch
      %17 = sbr.rel (0) target = $region13
    $region12: #{_esn_sequence_impl.1} parent=1 // pred_region
      _
    $region13: #{_esn_sequence_impl.1} parent=1 // pred_fallthru
      _
    // Predicated region
    $region14: #{_esn_sequence_impl.1} parent=1 // pred_check
      _
    $region15: #{_esn_sequence_impl.1} parent=1 // pred_check_branch
      %19 = sbr.rel (0) target = $region17
    $region16: #{_esn_sequence_impl.1} parent=1 // pred_region
      _
    $region17: #{_esn_sequence_impl.1} parent=1 // pred_fallthru
      _
    %v20 = vld [vmem:[%s0] sm:$0xff]
    %v21 = vld [vmem:[%s0 + $0x8] sm:$0xff]
    %v22 = vld [vmem:[%s0 + $0x10] sm:$0xff]
    %v23 = vld [vmem:[%s0 + $0x18] sm:$0xff]
    %v24 = vld [vmem:[%s0 + $0x20] sm:$0xff]
    %v25 = vld [vmem:[%s0 + $0x28] sm:$0xff]
    %v26 = vld [vmem:[%s0 + $0x30] sm:$0xff]
    %v27 = vld [vmem:[%s0 + $0x38] sm:$0xff]
    %v28 = vld [vmem:[%s0 + $0x40] sm:$0xff]
    %v29 = vld [vmem:[%s0 + $0x48] sm:$0xff]
    %v30 = vld [vmem:[%s0 + $0x50] sm:$0xff]
    %v31 = vld [vmem:[%s0 + $0x58] sm:$0xff]
    %v32 = vld [vmem:[%s0 + $0x60] sm:$0xff]
    %v33 = vld [vmem:[%s0 + $0x68] sm:$0xff]
    %v34 = vld [vmem:[%s0 + $0x70] sm:$0xff]
    %v35 = vld [vmem:[%s0 + $0x78] sm:$0xff]
    %v36 = vld [vmem:[%s0 + $0x80] sm:$0xff]
    %v37 = vld [vmem:[%s0 + $0x88] sm:$0xff]
    %v38 = vld [vmem:[%s0 + $0x90] sm:$0xff]
    %v39 = vld [vmem:[%s0 + $0x98] sm:$0xff]
    %v40 = vld [vmem:[%s0 + $0xa0] sm:$0xff]
    %v41 = vld [vmem:[%s0 + $0xa8] sm:$0xff]
    %v42 = vld [vmem:[%s0 + $0xb0] sm:$0xff]
    %v43 = vld [vmem:[%s0 + $0xb8] sm:$0xff]
    %v44 = vld [vmem:[%s0 + $0xc0] sm:$0xff]
    %v45 = vld [vmem:[%s0 + $0xc8] sm:$0xff]
    %v46 = vld [vmem:[%s0 + $0xd0] sm:$0xff]
    %v47 = vld [vmem:[%s0 + $0xd8] sm:$0xff]
    %v48 = vld [vmem:[%s0 + $0xe0] sm:$0xff]
    %v49 = vld [vmem:[%s0 + $0xe8] sm:$0xff]
    %v50 = vld [vmem:[%s0 + $0xf0] sm:$0xff]
    %v51 = vld [vmem:[%s0 + $0xf8] sm:$0xff]
    %v52 = vld [vmem:[%s2] sm:$0xf]
    %vm53 = vcmask 31744
    %v55 = vsel %vm53, %v20, 0
    %v58 = vsel %vm53, %v21, 0
    %v61 = vsel %vm53, %v22, 0
    %v64 = vsel %vm53, %v23, 0
    %v67 = vsel %vm53, %v24, 0
    %v70 = vsel %vm53, %v25, 0
    %v73 = vsel %vm53, %v26, 0
    %v76 = vsel %vm53, %v27, 0
    %v79 = vsel %vm53, %v28, 0
    %v82 = vsel %vm53, %v29, 0
    %v85 = vsel %vm53, %v30, 0
    %v88 = vsel %vm53, %v31, 0
    %v91 = vsel %vm53, %v32, 0
    %v94 = vsel %vm53, %v33, 0
    %v97 = vsel %vm53, %v34, 0
    %v100 = vsel %vm53, %v35, 0
    %v103 = vsel %vm53, %v36, 0
    %v106 = vsel %vm53, %v37, 0
    %v109 = vsel %vm53, %v38, 0
    %v112 = vsel %vm53, %v39, 0
    %v115 = vsel %vm53, %v40, 0
    %v118 = vsel %vm53, %v41, 0
    %v121 = vsel %vm53, %v42, 0
    %v124 = vsel %vm53, %v43, 0
    %v127 = vsel %vm53, %v44, 0
    %v130 = vsel %vm53, %v45, 0
    %v133 = vsel %vm53, %v46, 0
    %v136 = vsel %vm53, %v47, 0
    %v139 = vsel %vm53, %v48, 0
    %v142 = vsel %vm53, %v49, 0
    %v145 = vsel %vm53, %v50, 0
    %v148 = vsel %vm53, %v51, 0
    %vm150 = vcmask 1043456
    %v152 = vsel %vm150, %v52, 0
    %154 = vmatprep.subr.mxu0 0.0
    %155 = vmatpush1.msra.mxu0 0.0
    %156 = vmatprep.subr.mxu0 0.0
    %157 = vmatpush1.msra.mxu0 0.0
    %158 = vmatprep.subr.mxu0 0.0
    %159 = vmatpush1.msra.mxu0 0.0
    %160 = vmatprep.subr.mxu0 0.0
    %161 = vmatpush1.msra.mxu0 0.0
    %162 = vmatprep.subr.mxu0 0.0
    %163 = vmatpush1.msra.mxu0 0.0
    %164 = vmatprep.subr.mxu0 0.0
    %165 = vmatpush1.msra.mxu0 0.0
    %166 = vmatprep.subr.mxu0 0.0
    %167 = vmatpush1.msra.mxu0 0.0
    %168 = vmatprep.subr.mxu0 0.0
    %169 = vmatpush1.msra.mxu0 0.0
    %170 = vmatprep.subr.mxu0 0.0
    %171 = vmatpush1.msra.mxu0 0.0
    %172 = vmatprep.subr.mxu0 0.0
    %173 = vmatpush1.msra.mxu0 0.0
    %174 = vmatprep.subr.mxu0 0.0
    %175 = vmatpush1.msra.mxu0 0.0
    %176 = vmatprep.subr.mxu0 0.0
    %177 = vmatpush1.msra.mxu0 0.0
    %178 = vmatprep.subr.mxu0 0.0
    %179 = vmatpush1.msra.mxu0 0.0
    %180 = vmatprep.subr.mxu0 0.0
    %181 = vmatpush1.msra.mxu0 0.0
    %182 = vmatprep.subr.mxu0 0.0
    %183 = vmatpush1.msra.mxu0 0.0
    %184 = vmatprep.subr.mxu0 0.0
    %185 = vmatpush1.msra.mxu0 %v152
    %186 = vmatprep.subr.mxu0 0.0
    %187 = vmatpush2.msra.mxu0 0.0
    %188 = vmatprep.subr.mxu0 0.0
    %189 = vmatpush2.msra.mxu0 0.0
    %190 = vmatprep.subr.mxu0 0.0
    %191 = vmatpush2.msra.mxu0 0.0
    %192 = vmatprep.subr.mxu0 0.0
    %193 = vmatpush2.msra.mxu0 0.0
    %194 = vmatprep.subr.mxu0 0.0
    %195 = vmatpush2.msra.mxu0 0.0
    %196 = vmatprep.subr.mxu0 0.0
    %197 = vmatpush2.msra.mxu0 0.0
    %198 = vmatprep.subr.mxu0 0.0
    %199 = vmatpush2.msra.mxu0 0.0
    %200 = vmatprep.subr.mxu0 0.0
    %201 = vmatpush2.msra.mxu0 0.0
    %202 = vmatprep.subr.mxu0 0.0
    %203 = vmatpush2.msra.mxu0 0.0
    %204 = vmatprep.subr.mxu0 0.0
    %205 = vmatpush2.msra.mxu0 0.0
    %206 = vmatprep.subr.mxu0 0.0
    %207 = vmatpush2.msra.mxu0 0.0
    %208 = vmatprep.subr.mxu0 0.0
    %209 = vmatpush2.msra.mxu0 0.0
    %210 = vmatprep.subr.mxu0 0.0
    %211 = vmatpush2.msra.mxu0 0.0
    %212 = vmatprep.subr.mxu0 0.0
    %213 = vmatpush2.msra.mxu0 0.0
    %214 = vmatprep.subr.mxu0 0.0
    %215 = vmatpush2.msra.mxu0 0.0
    %216 = vmatprep.subr.mxu0 0.0
    %217 = vmatpush2.msra.mxu0 0.0
    %218 = vmatprep.mubr.f32.mxu0 0.0
    %219 = vmatmul.mubr.f32.gmra.mxu0 %v55
    %v220 = vpop.f32.mrf.mxu0
    %v221 = vadd.f32 0.0, %v220
    %v222 = vpop.f32.mrf.mxu0
    %223 = vmatprep.mubr.f32.mxu0 0.0
    %224 = vmatmul.mubr.f32.gmra.mxu0 %v58
    %v225 = vpop.f32.mrf.mxu0
    %v226 = vadd.f32 0.0, %v225
    %v227 = vpop.f32.mrf.mxu0
    %228 = vmatprep.mubr.f32.mxu0 0.0
    %229 = vmatmul.mubr.f32.gmra.mxu0 %v61
    %v230 = vpop.f32.mrf.mxu0
    %v231 = vadd.f32 0.0, %v230
    %v232 = vpop.f32.mrf.mxu0
    %233 = vmatprep.mubr.f32.mxu0 0.0
    %234 = vmatmul.mubr.f32.gmra.mxu0 %v64
    %v235 = vpop.f32.mrf.mxu0
    %v236 = vadd.f32 0.0, %v235
    %v237 = vpop.f32.mrf.mxu0
    %238 = vmatprep.mubr.f32.mxu0 0.0
    %239 = vmatmul.mubr.f32.gmra.mxu0 %v67
    %v240 = vpop.f32.mrf.mxu0
    %v241 = vadd.f32 0.0, %v240
    %v242 = vpop.f32.mrf.mxu0
    %243 = vmatprep.mubr.f32.mxu0 0.0
    %244 = vmatmul.mubr.f32.gmra.mxu0 %v70
    %v245 = vpop.f32.mrf.mxu0
    %v246 = vadd.f32 0.0, %v245
    %v247 = vpop.f32.mrf.mxu0
    %248 = vmatprep.mubr.f32.mxu0 0.0
    %249 = vmatmul.mubr.f32.gmra.mxu0 %v73
    %v250 = vpop.f32.mrf.mxu0
    %v251 = vadd.f32 0.0, %v250
    %v252 = vpop.f32.mrf.mxu0
    %253 = vmatprep.mubr.f32.mxu0 0.0
    %254 = vmatmul.mubr.f32.gmra.mxu0 %v76
    %v255 = vpop.f32.mrf.mxu0
    %v256 = vadd.f32 0.0, %v255
    %v257 = vpop.f32.mrf.mxu0
    %258 = vmatprep.mubr.f32.mxu0 0.0
    %259 = vmatmul.mubr.f32.gmra.mxu0 %v79
    %v260 = vpop.f32.mrf.mxu0
    %v261 = vadd.f32 0.0, %v260
    %v262 = vpop.f32.mrf.mxu0
    %263 = vmatprep.mubr.f32.mxu0 0.0
    %264 = vmatmul.mubr.f32.gmra.mxu0 %v82
    %v265 = vpop.f32.mrf.mxu0
    %v266 = vadd.f32 0.0, %v265
    %v267 = vpop.f32.mrf.mxu0
    %268 = vmatprep.mubr.f32.mxu0 0.0
    %269 = vmatmul.mubr.f32.gmra.mxu0 %v85
    %v270 = vpop.f32.mrf.mxu0
    %v271 = vadd.f32 0.0, %v270
    %v272 = vpop.f32.mrf.mxu0
    %273 = vmatprep.mubr.f32.mxu0 0.0
    %274 = vmatmul.mubr.f32.gmra.mxu0 %v88
    %v275 = vpop.f32.mrf.mxu0
    %v276 = vadd.f32 0.0, %v275
    %v277 = vpop.f32.mrf.mxu0
    %278 = vmatprep.mubr.f32.mxu0 0.0
    %279 = vmatmul.mubr.f32.gmra.mxu0 %v91
    %v280 = vpop.f32.mrf.mxu0
    %v281 = vadd.f32 0.0, %v280
    %v282 = vpop.f32.mrf.mxu0
    %283 = vmatprep.mubr.f32.mxu0 0.0
    %284 = vmatmul.mubr.f32.gmra.mxu0 %v94
    %v285 = vpop.f32.mrf.mxu0
    %v286 = vadd.f32 0.0, %v285
    %v287 = vpop.f32.mrf.mxu0
    %288 = vmatprep.mubr.f32.mxu0 0.0
    %289 = vmatmul.mubr.f32.gmra.mxu0 %v97
    %v290 = vpop.f32.mrf.mxu0
    %v291 = vadd.f32 0.0, %v290
    %v292 = vpop.f32.mrf.mxu0
    %293 = vmatprep.mubr.f32.mxu0 0.0
    %294 = vmatmul.mubr.f32.gmra.mxu0 %v100
    %v295 = vpop.f32.mrf.mxu0
    %v296 = vadd.f32 0.0, %v295
    %v297 = vpop.f32.mrf.mxu0
    %298 = vmatprep.mubr.f32.mxu0 0.0
    %299 = vmatmul.mubr.f32.gmra.mxu0 %v103
    %v300 = vpop.f32.mrf.mxu0
    %v301 = vadd.f32 0.0, %v300
    %v302 = vpop.f32.mrf.mxu0
    %303 = vmatprep.mubr.f32.mxu0 0.0
    %304 = vmatmul.mubr.f32.gmra.mxu0 %v106
    %v305 = vpop.f32.mrf.mxu0
    %v306 = vadd.f32 0.0, %v305
    %v307 = vpop.f32.mrf.mxu0
    %308 = vmatprep.mubr.f32.mxu0 0.0
    %309 = vmatmul.mubr.f32.gmra.mxu0 %v109
    %v310 = vpop.f32.mrf.mxu0
    %v311 = vadd.f32 0.0, %v310
    %v312 = vpop.f32.mrf.mxu0
    %313 = vmatprep.mubr.f32.mxu0 0.0
    %314 = vmatmul.mubr.f32.gmra.mxu0 %v112
    %v315 = vpop.f32.mrf.mxu0
    %v316 = vadd.f32 0.0, %v315
    %v317 = vpop.f32.mrf.mxu0
    %318 = vmatprep.mubr.f32.mxu0 0.0
    %319 = vmatmul.mubr.f32.gmra.mxu0 %v115
    %v320 = vpop.f32.mrf.mxu0
    %v321 = vadd.f32 0.0, %v320
    %v322 = vpop.f32.mrf.mxu0
    %323 = vmatprep.mubr.f32.mxu0 0.0
    %324 = vmatmul.mubr.f32.gmra.mxu0 %v118
    %v325 = vpop.f32.mrf.mxu0
    %v326 = vadd.f32 0.0, %v325
    %v327 = vpop.f32.mrf.mxu0
    %328 = vmatprep.mubr.f32.mxu0 0.0
    %329 = vmatmul.mubr.f32.gmra.mxu0 %v121
    %v330 = vpop.f32.mrf.mxu0
    %v331 = vadd.f32 0.0, %v330
    %v332 = vpop.f32.mrf.mxu0
    %333 = vmatprep.mubr.f32.mxu0 0.0
    %334 = vmatmul.mubr.f32.gmra.mxu0 %v124
    %v335 = vpop.f32.mrf.mxu0
    %v336 = vadd.f32 0.0, %v335
    %v337 = vpop.f32.mrf.mxu0
    %338 = vmatprep.mubr.f32.mxu0 0.0
    %339 = vmatmul.mubr.f32.gmra.mxu0 %v127
    %v340 = vpop.f32.mrf.mxu0
    %v341 = vadd.f32 0.0, %v340
    %v342 = vpop.f32.mrf.mxu0
    %343 = vmatprep.mubr.f32.mxu0 0.0
    %344 = vmatmul.mubr.f32.gmra.mxu0 %v130
    %v345 = vpop.f32.mrf.mxu0
    %v346 = vadd.f32 0.0, %v345
    %v347 = vpop.f32.mrf.mxu0
    %348 = vmatprep.mubr.f32.mxu0 0.0
    %349 = vmatmul.mubr.f32.gmra.mxu0 %v133
    %v350 = vpop.f32.mrf.mxu0
    %v351 = vadd.f32 0.0, %v350
    %v352 = vpop.f32.mrf.mxu0
    %353 = vmatprep.mubr.f32.mxu0 0.0
    %354 = vmatmul.mubr.f32.gmra.mxu0 %v136
    %v355 = vpop.f32.mrf.mxu0
    %v356 = vadd.f32 0.0, %v355
    %v357 = vpop.f32.mrf.mxu0
    %358 = vmatprep.mubr.f32.mxu0 0.0
    %359 = vmatmul.mubr.f32.gmra.mxu0 %v139
    %v360 = vpop.f32.mrf.mxu0
    %v361 = vadd.f32 0.0, %v360
    %v362 = vpop.f32.mrf.mxu0
    %363 = vmatprep.mubr.f32.mxu0 0.0
    %364 = vmatmul.mubr.f32.gmra.mxu0 %v142
    %v365 = vpop.f32.mrf.mxu0
    %v366 = vadd.f32 0.0, %v365
    %v367 = vpop.f32.mrf.mxu0
    %368 = vmatprep.mubr.f32.mxu0 0.0
    %369 = vmatmul.mubr.f32.gmra.mxu0 %v145
    %v370 = vpop.f32.mrf.mxu0
    %v371 = vadd.f32 0.0, %v370
    %v372 = vpop.f32.mrf.mxu0
    %373 = vmatprep.mubr.f32.mxu0 0.0
    %374 = vmatmul.mubr.f32.gmra.mxu0 %v148
    %v375 = vpop.f32.mrf.mxu0
    %v376 = vadd.f32 0.0, %v375
    %v377 = vpop.f32.mrf.mxu0
    %378 = vdwg.mxu0
    %vm379 = vcmask 261120
    %380 = vst.msk [vmem:[#allocation2] sm:$0xff] %vm379, %v221
    %381 = vst.msk [vmem:[#allocation2 + $0x8] sm:$0xff] %vm379, %v226
    %382 = vst.msk [vmem:[#allocation2 + $0x10] sm:$0xff] %vm379, %v231
    %383 = vst.msk [vmem:[#allocation2 + $0x18] sm:$0xff] %vm379, %v236
    %384 = vst.msk [vmem:[#allocation2 + $0x20] sm:$0xff] %vm379, %v241
    %385 = vst.msk [vmem:[#allocation2 + $0x28] sm:$0xff] %vm379, %v246
    %386 = vst.msk [vmem:[#allocation2 + $0x30] sm:$0xff] %vm379, %v251
    %387 = vst.msk [vmem:[#allocation2 + $0x38] sm:$0xff] %vm379, %v256
    %388 = vst.msk [vmem:[#allocation2 + $0x40] sm:$0xff] %vm379, %v261
    %389 = vst.msk [vmem:[#allocation2 + $0x48] sm:$0xff] %vm379, %v266
    %390 = vst.msk [vmem:[#allocation2 + $0x50] sm:$0xff] %vm379, %v271
    %391 = vst.msk [vmem:[#allocation2 + $0x58] sm:$0xff] %vm379, %v276
    %392 = vst.msk [vmem:[#allocation2 + $0x60] sm:$0xff] %vm379, %v281
    %393 = vst.msk [vmem:[#allocation2 + $0x68] sm:$0xff] %vm379, %v286
    %394 = vst.msk [vmem:[#allocation2 + $0x70] sm:$0xff] %vm379, %v291
    %395 = vst.msk [vmem:[#allocation2 + $0x78] sm:$0xff] %vm379, %v296
    %396 = vst.msk [vmem:[#allocation2 + $0x80] sm:$0xff] %vm379, %v301
    %397 = vst.msk [vmem:[#allocation2 + $0x88] sm:$0xff] %vm379, %v306
    %398 = vst.msk [vmem:[#allocation2 + $0x90] sm:$0xff] %vm379, %v311
    %399 = vst.msk [vmem:[#allocation2 + $0x98] sm:$0xff] %vm379, %v316
    %400 = vst.msk [vmem:[#allocation2 + $0xa0] sm:$0xff] %vm379, %v321
    %401 = vst.msk [vmem:[#allocation2 + $0xa8] sm:$0xff] %vm379, %v326
    %402 = vst.msk [vmem:[#allocation2 + $0xb0] sm:$0xff] %vm379, %v331
    %403 = vst.msk [vmem:[#allocation2 + $0xb8] sm:$0xff] %vm379, %v336
    %404 = vst.msk [vmem:[#allocation2 + $0xc0] sm:$0xff] %vm379, %v341
    %405 = vst.msk [vmem:[#allocation2 + $0xc8] sm:$0xff] %vm379, %v346
    %406 = vst.msk [vmem:[#allocation2 + $0xd0] sm:$0xff] %vm379, %v351
    %407 = vst.msk [vmem:[#allocation2 + $0xd8] sm:$0xff] %vm379, %v356
    %408 = vst.msk [vmem:[#allocation2 + $0xe0] sm:$0xff] %vm379, %v361
    %409 = vst.msk [vmem:[#allocation2 + $0xe8] sm:$0xff] %vm379, %v366
    %410 = vst.msk [vmem:[#allocation2 + $0xf0] sm:$0xff] %vm379, %v371
    %411 = vst.msk [vmem:[#allocation2 + $0xf8] sm:$0xff] %vm379, %v376
    %v412 = vld [vmem:[%s3] sm:$0xff]
    %v413 = vld [vmem:[%s3 + $0x8] sm:$0xff]
    %v414 = vld [vmem:[%s3 + $0x10] sm:$0xff]
    %v415 = vld [vmem:[%s3 + $0x18] sm:$0xff]
    %v416 = vld [vmem:[%s1] sm:$0xff]
    %v417 = vld [vmem:[%s1 + $0x8] sm:$0xff]
    %v418 = vld [vmem:[#allocation2] sm:$0xff]
    %v419 = vld [vmem:[#allocation2 + $0x8] sm:$0xff]
    %v421 = vsel %vm379, %v416, 0
    %v424 = vsel %vm379, %v417, 0
    %426 = vmatprep.subr.mxu0 0.0
    %427 = vmatpush1.msra.mxu0 0.0
    %428 = vmatprep.subr.mxu0 0.0
    %429 = vmatpush1.msra.mxu0 0.0
    %430 = vmatprep.subr.mxu0 0.0
    %431 = vmatpush1.msra.mxu0 0.0
    %432 = vmatprep.subr.mxu0 0.0
    %433 = vmatpush1.msra.mxu0 0.0
    %434 = vmatprep.subr.mxu0 0.0
    %435 = vmatpush1.msra.mxu0 0.0
    %436 = vmatprep.subr.mxu0 0.0
    %437 = vmatpush1.msra.mxu0 0.0
    %438 = vmatprep.subr.mxu0 0.0
    %439 = vmatpush1.msra.mxu0 0.0
    %440 = vmatprep.subr.mxu0 0.0
    %441 = vmatpush1.msra.mxu0 0.0
    %442 = vmatprep.subr.mxu0 0.0
    %443 = vmatpush1.msra.mxu0 0.0
    %444 = vmatprep.subr.mxu0 0.0
    %445 = vmatpush1.msra.mxu0 0.0
    %446 = vmatprep.subr.mxu0 0.0
    %447 = vmatpush1.msra.mxu0 0.0
    %448 = vmatprep.subr.mxu0 0.0
    %449 = vmatpush1.msra.mxu0 0.0
    %450 = vmatprep.subr.mxu0 0.0
    %451 = vmatpush1.msra.mxu0 %v415
    %452 = vmatprep.subr.mxu0 0.0
    %453 = vmatpush1.msra.mxu0 %v414
    %454 = vmatprep.subr.mxu0 0.0
    %455 = vmatpush1.msra.mxu0 %v413
    %456 = vmatprep.subr.mxu0 0.0
    %457 = vmatpush1.msra.mxu0 %v412
    %458 = vmatprep.subr.mxu0 0.0
    %459 = vmatpush2.msra.mxu0 0.0
    %460 = vmatprep.subr.mxu0 0.0
    %461 = vmatpush2.msra.mxu0 0.0
    %462 = vmatprep.subr.mxu0 0.0
    %463 = vmatpush2.msra.mxu0 0.0
    %464 = vmatprep.subr.mxu0 0.0
    %465 = vmatpush2.msra.mxu0 0.0
    %466 = vmatprep.subr.mxu0 0.0
    %467 = vmatpush2.msra.mxu0 0.0
    %468 = vmatprep.subr.mxu0 0.0
    %469 = vmatpush2.msra.mxu0 0.0
    %470 = vmatprep.subr.mxu0 0.0
    %471 = vmatpush2.msra.mxu0 0.0
    %472 = vmatprep.subr.mxu0 0.0
    %473 = vmatpush2.msra.mxu0 0.0
    %474 = vmatprep.subr.mxu0 0.0
    %475 = vmatpush2.msra.mxu0 0.0
    %476 = vmatprep.subr.mxu0 0.0
    %477 = vmatpush2.msra.mxu0 0.0
    %478 = vmatprep.subr.mxu0 0.0
    %479 = vmatpush2.msra.mxu0 0.0
    %480 = vmatprep.subr.mxu0 0.0
    %481 = vmatpush2.msra.mxu0 0.0
    %482 = vmatprep.subr.mxu0 0.0
    %483 = vmatpush2.msra.mxu0 0.0
    %484 = vmatprep.subr.mxu0 0.0
    %485 = vmatpush2.msra.mxu0 0.0
    %486 = vmatprep.subr.mxu0 0.0
    %487 = vmatpush2.msra.mxu0 0.0
    %488 = vmatprep.subr.mxu0 0.0
    %489 = vmatpush2.msra.mxu0 0.0
    %490 = vmatprep.mubr.f32.mxu0 0.0
    %491 = vmatmul.mubr.f32.gmra.mxu0 %v421
    %v492 = vpop.f32.mrf.mxu0
    %v493 = vadd.f32 0.0, %v492
    %v494 = vpop.f32.mrf.mxu0
    %495 = vmatprep.mubr.f32.mxu0 0.0
    %496 = vmatmul.mubr.f32.gmra.mxu0 %v424
    %v497 = vpop.f32.mrf.mxu0
    %v498 = vadd.f32 0.0, %v497
    %v499 = vpop.f32.mrf.mxu0
    %500 = vdwg.mxu0
    %v501 = vadd.f32 %v418, %v493
    %v502 = vadd.f32 %v419, %v498
    %v503 = vmul.f32 %v416, 0.7
    %v504 = vmul.f32 %v417, 0.7
    %v505 = vtanh.pop %v501
    %v506 = vtanh.pop %v502
    %v507 = vmul.f32 %v505, 0.3
    %v508 = vmul.f32 %v506, 0.3
    %v509 = vadd.f32 %v503, %v507
    %v510 = vadd.f32 %v504, %v508
    %511 = vst.msk [vmem:[%s4] sm:$0xff] %vm379, %v509
    %512 = vst.msk [vmem:[%s4 + $0x8] sm:$0xff] %vm379, %v510
    %s513 = scalar_lea.vmem [#allocation2], 16
    %v514 = vld [vmem:[%s513] sm:$0xff]
    %v515 = vld [vmem:[%s513 + $0x8] sm:$0xff]
    %v517 = vsel %vm379, %v509, 0
    %v520 = vsel %vm379, %v510, 0
    %522 = vmatprep.subr.mxu0 0.0
    %523 = vmatpush1.msra.mxu0 0.0
    %524 = vmatprep.subr.mxu0 0.0
    %525 = vmatpush1.msra.mxu0 0.0
    %526 = vmatprep.subr.mxu0 0.0
    %527 = vmatpush1.msra.mxu0 0.0
    %528 = vmatprep.subr.mxu0 0.0
    %529 = vmatpush1.msra.mxu0 0.0
    %530 = vmatprep.subr.mxu0 0.0
    %531 = vmatpush1.msra.mxu0 0.0
    %532 = vmatprep.subr.mxu0 0.0
    %533 = vmatpush1.msra.mxu0 0.0
    %534 = vmatprep.subr.mxu0 0.0
    %535 = vmatpush1.msra.mxu0 0.0
    %536 = vmatprep.subr.mxu0 0.0
    %537 = vmatpush1.msra.mxu0 0.0
    %538 = vmatprep.subr.mxu0 0.0
    %539 = vmatpush1.msra.mxu0 0.0
    %540 = vmatprep.subr.mxu0 0.0
    %541 = vmatpush1.msra.mxu0 0.0
    %542 = vmatprep.subr.mxu0 0.0
    %543 = vmatpush1.msra.mxu0 0.0
    %544 = vmatprep.subr.mxu0 0.0
    %545 = vmatpush1.msra.mxu0 0.0
    %546 = vmatprep.subr.mxu0 0.0
    %547 = vmatpush1.msra.mxu0 %v415
    %548 = vmatprep.subr.mxu0 0.0
    %549 = vmatpush1.msra.mxu0 %v414
    %550 = vmatprep.subr.mxu0 0.0
    %551 = vmatpush1.msra.mxu0 %v413
    %552 = vmatprep.subr.mxu0 0.0
    %553 = vmatpush1.msra.mxu0 %v412
    %554 = vmatprep.subr.mxu0 0.0
    %555 = vmatpush2.msra.mxu0 0.0
    %556 = vmatprep.subr.mxu0 0.0
    %557 = vmatpush2.msra.mxu0 0.0
    %558 = vmatprep.subr.mxu0 0.0
    %559 = vmatpush2.msra.mxu0 0.0
    %560 = vmatprep.subr.mxu0 0.0
    %561 = vmatpush2.msra.mxu0 0.0
    %562 = vmatprep.subr.mxu0 0.0
    %563 = vmatpush2.msra.mxu0 0.0
    %564 = vmatprep.subr.mxu0 0.0
    %565 = vmatpush2.msra.mxu0 0.0
    %566 = vmatprep.subr.mxu0 0.0
    %567 = vmatpush2.msra.mxu0 0.0
    %568 = vmatprep.subr.mxu0 0.0
    %569 = vmatpush2.msra.mxu0 0.0
    %570 = vmatprep.subr.mxu0 0.0
    %571 = vmatpush2.msra.mxu0 0.0
    %572 = vmatprep.subr.mxu0 0.0
    %573 = vmatpush2.msra.mxu0 0.0
    %574 = vmatprep.subr.mxu0 0.0
    %575 = vmatpush2.msra.mxu0 0.0
    %576 = vmatprep.subr.mxu0 0.0
    %577 = vmatpush2.msra.mxu0 0.0
    %578 = vmatprep.subr.mxu0 0.0
    %579 = vmatpush2.msra.mxu0 0.0
    %580 = vmatprep.subr.mxu0 0.0
    %581 = vmatpush2.msra.mxu0 0.0
    %582 = vmatprep.subr.mxu0 0.0
    %583 = vmatpush2.msra.mxu0 0.0
    %584 = vmatprep.subr.mxu0 0.0
    %585 = vmatpush2.msra.mxu0 0.0
    %586 = vmatprep.mubr.f32.mxu0 0.0
    %587 = vmatmul.mubr.f32.gmra.mxu0 %v517
    %v588 = vpop.f32.mrf.mxu0
    %v589 = vadd.f32 0.0, %v588
    %v590 = vpop.f32.mrf.mxu0
    %591 = vmatprep.mubr.f32.mxu0 0.0
    %592 = vmatmul.mubr.f32.gmra.mxu0 %v520
    %v593 = vpop.f32.mrf.mxu0
    %v594 = vadd.f32 0.0, %v593
    %v595 = vpop.f32.mrf.mxu0
    %596 = vdwg.mxu0
    %v597 = vadd.f32 %v514, %v589
    %v598 = vadd.f32 %v515, %v594
    %v599 = vmul.f32 %v509, 0.7
    %v600 = vmul.f32 %v510, 0.7
    %v601 = vtanh.pop %v597
    %v602 = vtanh.pop %v598
    %v603 = vmul.f32 %v601, 0.3
    %v604 = vmul.f32 %v602, 0.3
    %v605 = vadd.f32 %v599, %v603
    %v606 = vadd.f32 %v600, %v604
    %s607 = scalar_lea.vmem %s4, 16
    %608 = vst.msk [vmem:[%s607] sm:$0xff] %vm379, %v605
    %609 = vst.msk [vmem:[%s607 + $0x8] sm:$0xff] %vm379, %v606
    %s610 = scalar_lea.vmem [#allocation2], 32
    %v611 = vld [vmem:[%s610] sm:$0xff]
    %v612 = vld [vmem:[%s610 + $0x8] sm:$0xff]
    %v614 = vsel %vm379, %v605, 0
    %v617 = vsel %vm379, %v606, 0
    %619 = vmatprep.subr.mxu0 0.0
    %620 = vmatpush1.msra.mxu0 0.0
    %621 = vmatprep.subr.mxu0 0.0
    %622 = vmatpush1.msra.mxu0 0.0
    %623 = vmatprep.subr.mxu0 0.0
    %624 = vmatpush1.msra.mxu0 0.0
    %625 = vmatprep.subr.mxu0 0.0
    %626 = vmatpush1.msra.mxu0 0.0
    %627 = vmatprep.subr.mxu0 0.0
    %628 = vmatpush1.msra.mxu0 0.0
    %629 = vmatprep.subr.mxu0 0.0
    %630 = vmatpush1.msra.mxu0 0.0
    %631 = vmatprep.subr.mxu0 0.0
    %632 = vmatpush1.msra.mxu0 0.0
    %633 = vmatprep.subr.mxu0 0.0
    %634 = vmatpush1.msra.mxu0 0.0
    %635 = vmatprep.subr.mxu0 0.0
    %636 = vmatpush1.msra.mxu0 0.0
    %637 = vmatprep.subr.mxu0 0.0
    %638 = vmatpush1.msra.mxu0 0.0
    %639 = vmatprep.subr.mxu0 0.0
    %640 = vmatpush1.msra.mxu0 0.0
    %641 = vmatprep.subr.mxu0 0.0
    %642 = vmatpush1.msra.mxu0 0.0
    %643 = vmatprep.subr.mxu0 0.0
    %644 = vmatpush1.msra.mxu0 %v415
    %645 = vmatprep.subr.mxu0 0.0
    %646 = vmatpush1.msra.mxu0 %v414
    %647 = vmatprep.subr.mxu0 0.0
    %648 = vmatpush1.msra.mxu0 %v413
    %649 = vmatprep.subr.mxu0 0.0
    %650 = vmatpush1.msra.mxu0 %v412
    %651 = vmatprep.subr.mxu0 0.0
    %652 = vmatpush2.msra.mxu0 0.0
    %653 = vmatprep.subr.mxu0 0.0
    %654 = vmatpush2.msra.mxu0 0.0
    %655 = vmatprep.subr.mxu0 0.0
    %656 = vmatpush2.msra.mxu0 0.0
    %657 = vmatprep.subr.mxu0 0.0
    %658 = vmatpush2.msra.mxu0 0.0
    %659 = vmatprep.subr.mxu0 0.0
    %660 = vmatpush2.msra.mxu0 0.0
    %661 = vmatprep.subr.mxu0 0.0
    %662 = vmatpush2.msra.mxu0 0.0
    %663 = vmatprep.subr.mxu0 0.0
    %664 = vmatpush2.msra.mxu0 0.0
    %665 = vmatprep.subr.mxu0 0.0
    %666 = vmatpush2.msra.mxu0 0.0
    %667 = vmatprep.subr.mxu0 0.0
    %668 = vmatpush2.msra.mxu0 0.0
    %669 = vmatprep.subr.mxu0 0.0
    %670 = vmatpush2.msra.mxu0 0.0
    %671 = vmatprep.subr.mxu0 0.0
    %672 = vmatpush2.msra.mxu0 0.0
    %673 = vmatprep.subr.mxu0 0.0
    %674 = vmatpush2.msra.mxu0 0.0
    %675 = vmatprep.subr.mxu0 0.0
    %676 = vmatpush2.msra.mxu0 0.0
    %677 = vmatprep.subr.mxu0 0.0
    %678 = vmatpush2.msra.mxu0 0.0
    %679 = vmatprep.subr.mxu0 0.0
    %680 = vmatpush2.msra.mxu0 0.0
    %681 = vmatprep.subr.mxu0 0.0
    %682 = vmatpush2.msra.mxu0 0.0
    %683 = vmatprep.mubr.f32.mxu0 0.0
    %684 = vmatmul.mubr.f32.gmra.mxu0 %v614
    %v685 = vpop.f32.mrf.mxu0
    %v686 = vadd.f32 0.0, %v685
    %v687 = vpop.f32.mrf.mxu0
    %688 = vmatprep.mubr.f32.mxu0 0.0
    %689 = vmatmul.mubr.f32.gmra.mxu0 %v617
    %v690 = vpop.f32.mrf.mxu0
    %v691 = vadd.f32 0.0, %v690
    %v692 = vpop.f32.mrf.mxu0
    %693 = vdwg.mxu0
    %v694 = vadd.f32 %v611, %v686
    %v695 = vadd.f32 %v612, %v691
    %v696 = vmul.f32 %v605, 0.7
    %v697 = vmul.f32 %v606, 0.7
    %v698 = vtanh.pop %v694
    %v699 = vtanh.pop %v695
    %v700 = vmul.f32 %v698, 0.3
    %v701 = vmul.f32 %v699, 0.3
    %v702 = vadd.f32 %v696, %v700
    %v703 = vadd.f32 %v697, %v701
    %s704 = scalar_lea.vmem %s4, 32
    %705 = vst.msk [vmem:[%s704] sm:$0xff] %vm379, %v702
    %706 = vst.msk [vmem:[%s704 + $0x8] sm:$0xff] %vm379, %v703
    %s707 = scalar_lea.vmem [#allocation2], 48
    %v708 = vld [vmem:[%s707] sm:$0xff]
    %v709 = vld [vmem:[%s707 + $0x8] sm:$0xff]
    %v711 = vsel %vm379, %v702, 0
    %v714 = vsel %vm379, %v703, 0
    %716 = vmatprep.subr.mxu0 0.0
    %717 = vmatpush1.msra.mxu0 0.0
    %718 = vmatprep.subr.mxu0 0.0
    %719 = vmatpush1.msra.mxu0 0.0
    %720 = vmatprep.subr.mxu0 0.0
    %721 = vmatpush1.msra.mxu0 0.0
    %722 = vmatprep.subr.mxu0 0.0
    %723 = vmatpush1.msra.mxu0 0.0
    %724 = vmatprep.subr.mxu0 0.0
    %725 = vmatpush1.msra.mxu0 0.0
    %726 = vmatprep.subr.mxu0 0.0
    %727 = vmatpush1.msra.mxu0 0.0
    %728 = vmatprep.subr.mxu0 0.0
    %729 = vmatpush1.msra.mxu0 0.0
    %730 = vmatprep.subr.mxu0 0.0
    %731 = vmatpush1.msra.mxu0 0.0
    %732 = vmatprep.subr.mxu0 0.0
    %733 = vmatpush1.msra.mxu0 0.0
    %734 = vmatprep.subr.mxu0 0.0
    %735 = vmatpush1.msra.mxu0 0.0
    %736 = vmatprep.subr.mxu0 0.0
    %737 = vmatpush1.msra.mxu0 0.0
    %738 = vmatprep.subr.mxu0 0.0
    %739 = vmatpush1.msra.mxu0 0.0
    %740 = vmatprep.subr.mxu0 0.0
    %741 = vmatpush1.msra.mxu0 %v415
    %742 = vmatprep.subr.mxu0 0.0
    %743 = vmatpush1.msra.mxu0 %v414
    %744 = vmatprep.subr.mxu0 0.0
    %745 = vmatpush1.msra.mxu0 %v413
    %746 = vmatprep.subr.mxu0 0.0
    %747 = vmatpush1.msra.mxu0 %v412
    %748 = vmatprep.subr.mxu0 0.0
    %749 = vmatpush2.msra.mxu0 0.0
    %750 = vmatprep.subr.mxu0 0.0
    %751 = vmatpush2.msra.mxu0 0.0
    %752 = vmatprep.subr.mxu0 0.0
    %753 = vmatpush2.msra.mxu0 0.0
    %754 = vmatprep.subr.mxu0 0.0
    %755 = vmatpush2.msra.mxu0 0.0
    %756 = vmatprep.subr.mxu0 0.0
    %757 = vmatpush2.msra.mxu0 0.0
    %758 = vmatprep.subr.mxu0 0.0
    %759 = vmatpush2.msra.mxu0 0.0
    %760 = vmatprep.subr.mxu0 0.0
    %761 = vmatpush2.msra.mxu0 0.0
    %762 = vmatprep.subr.mxu0 0.0
    %763 = vmatpush2.msra.mxu0 0.0
    %764 = vmatprep.subr.mxu0 0.0
    %765 = vmatpush2.msra.mxu0 0.0
    %766 = vmatprep.subr.mxu0 0.0
    %767 = vmatpush2.msra.mxu0 0.0
    %768 = vmatprep.subr.mxu0 0.0
    %769 = vmatpush2.msra.mxu0 0.0
    %770 = vmatprep.subr.mxu0 0.0
    %771 = vmatpush2.msra.mxu0 0.0
    %772 = vmatprep.subr.mxu0 0.0
    %773 = vmatpush2.msra.mxu0 0.0
    %774 = vmatprep.subr.mxu0 0.0
    %775 = vmatpush2.msra.mxu0 0.0
    %776 = vmatprep.subr.mxu0 0.0
    %777 = vmatpush2.msra.mxu0 0.0
    %778 = vmatprep.subr.mxu0 0.0
    %779 = vmatpush2.msra.mxu0 0.0
    %780 = vmatprep.mubr.f32.mxu0 0.0
    %781 = vmatmul.mubr.f32.gmra.mxu0 %v711
    %v782 = vpop.f32.mrf.mxu0
    %v783 = vadd.f32 0.0, %v782
    %v784 = vpop.f32.mrf.mxu0
    %785 = vmatprep.mubr.f32.mxu0 0.0
    %786 = vmatmul.mubr.f32.gmra.mxu0 %v714
    %v787 = vpop.f32.mrf.mxu0
    %v788 = vadd.f32 0.0, %v787
    %v789 = vpop.f32.mrf.mxu0
    %790 = vdwg.mxu0
    %v791 = vadd.f32 %v708, %v783
    %v792 = vadd.f32 %v709, %v788
    %v793 = vmul.f32 %v702, 0.7
    %v794 = vmul.f32 %v703, 0.7
    %v795 = vtanh.pop %v791
    %v796 = vtanh.pop %v792
    %v797 = vmul.f32 %v795, 0.3
    %v798 = vmul.f32 %v796, 0.3
    %v799 = vadd.f32 %v793, %v797
    %v800 = vadd.f32 %v794, %v798
    %s801 = scalar_lea.vmem %s4, 48
    %802 = vst.msk [vmem:[%s801] sm:$0xff] %vm379, %v799
    %803 = vst.msk [vmem:[%s801 + $0x8] sm:$0xff] %vm379, %v800
    %s804 = scalar_lea.vmem [#allocation2], 64
    %v805 = vld [vmem:[%s804] sm:$0xff]
    %v806 = vld [vmem:[%s804 + $0x8] sm:$0xff]
    %v808 = vsel %vm379, %v799, 0
    %v811 = vsel %vm379, %v800, 0
    %813 = vmatprep.subr.mxu0 0.0
    %814 = vmatpush1.msra.mxu0 0.0
    %815 = vmatprep.subr.mxu0 0.0
    %816 = vmatpush1.msra.mxu0 0.0
    %817 = vmatprep.subr.mxu0 0.0
    %818 = vmatpush1.msra.mxu0 0.0
    %819 = vmatprep.subr.mxu0 0.0
    %820 = vmatpush1.msra.mxu0 0.0
    %821 = vmatprep.subr.mxu0 0.0
    %822 = vmatpush1.msra.mxu0 0.0
    %823 = vmatprep.subr.mxu0 0.0
    %824 = vmatpush1.msra.mxu0 0.0
    %825 = vmatprep.subr.mxu0 0.0
    %826 = vmatpush1.msra.mxu0 0.0
    %827 = vmatprep.subr.mxu0 0.0
    %828 = vmatpush1.msra.mxu0 0.0
    %829 = vmatprep.subr.mxu0 0.0
    %830 = vmatpush1.msra.mxu0 0.0
    %831 = vmatprep.subr.mxu0 0.0
    %832 = vmatpush1.msra.mxu0 0.0
    %833 = vmatprep.subr.mxu0 0.0
    %834 = vmatpush1.msra.mxu0 0.0
    %835 = vmatprep.subr.mxu0 0.0
    %836 = vmatpush1.msra.mxu0 0.0
    %837 = vmatprep.subr.mxu0 0.0
    %838 = vmatpush1.msra.mxu0 %v415
    %839 = vmatprep.subr.mxu0 0.0
    %840 = vmatpush1.msra.mxu0 %v414
    %841 = vmatprep.subr.mxu0 0.0
    %842 = vmatpush1.msra.mxu0 %v413
    %843 = vmatprep.subr.mxu0 0.0
    %844 = vmatpush1.msra.mxu0 %v412
    %845 = vmatprep.subr.mxu0 0.0
    %846 = vmatpush2.msra.mxu0 0.0
    %847 = vmatprep.subr.mxu0 0.0
    %848 = vmatpush2.msra.mxu0 0.0
    %849 = vmatprep.subr.mxu0 0.0
    %850 = vmatpush2.msra.mxu0 0.0
    %851 = vmatprep.subr.mxu0 0.0
    %852 = vmatpush2.msra.mxu0 0.0
    %853 = vmatprep.subr.mxu0 0.0
    %854 = vmatpush2.msra.mxu0 0.0
    %855 = vmatprep.subr.mxu0 0.0
    %856 = vmatpush2.msra.mxu0 0.0
    %857 = vmatprep.subr.mxu0 0.0
    %858 = vmatpush2.msra.mxu0 0.0
    %859 = vmatprep.subr.mxu0 0.0
    %860 = vmatpush2.msra.mxu0 0.0
    %861 = vmatprep.subr.mxu0 0.0
    %862 = vmatpush2.msra.mxu0 0.0
    %863 = vmatprep.subr.mxu0 0.0
    %864 = vmatpush2.msra.mxu0 0.0
    %865 = vmatprep.subr.mxu0 0.0
    %866 = vmatpush2.msra.mxu0 0.0
    %867 = vmatprep.subr.mxu0 0.0
    %868 = vmatpush2.msra.mxu0 0.0
    %869 = vmatprep.subr.mxu0 0.0
    %870 = vmatpush2.msra.mxu0 0.0
    %871 = vmatprep.subr.mxu0 0.0
    %872 = vmatpush2.msra.mxu0 0.0
    %873 = vmatprep.subr.mxu0 0.0
    %874 = vmatpush2.msra.mxu0 0.0
    %875 = vmatprep.subr.mxu0 0.0
    %876 = vmatpush2.msra.mxu0 0.0
    %877 = vmatprep.mubr.f32.mxu0 0.0
    %878 = vmatmul.mubr.f32.gmra.mxu0 %v808
    %v879 = vpop.f32.mrf.mxu0
    %v880 = vadd.f32 0.0, %v879
    %v881 = vpop.f32.mrf.mxu0
    %882 = vmatprep.mubr.f32.mxu0 0.0
    %883 = vmatmul.mubr.f32.gmra.mxu0 %v811
    %v884 = vpop.f32.mrf.mxu0
    %v885 = vadd.f32 0.0, %v884
    %v886 = vpop.f32.mrf.mxu0
    %887 = vdwg.mxu0
    %v888 = vadd.f32 %v805, %v880
    %v889 = vadd.f32 %v806, %v885
    %v890 = vmul.f32 %v799, 0.7
    %v891 = vmul.f32 %v800, 0.7
    %v892 = vtanh.pop %v888
    %v893 = vtanh.pop %v889
    %v894 = vmul.f32 %v892, 0.3
    %v895 = vmul.f32 %v893, 0.3
    %v896 = vadd.f32 %v890, %v894
    %v897 = vadd.f32 %v891, %v895
    %s898 = scalar_lea.vmem %s4, 64
    %899 = vst.msk [vmem:[%s898] sm:$0xff] %vm379, %v896
    %900 = vst.msk [vmem:[%s898 + $0x8] sm:$0xff] %vm379, %v897
    %s901 = scalar_lea.vmem [#allocation2], 80
    %v902 = vld [vmem:[%s901] sm:$0xff]
    %v903 = vld [vmem:[%s901 + $0x8] sm:$0xff]
    %v905 = vsel %vm379, %v896, 0
    %v908 = vsel %vm379, %v897, 0
    %910 = vmatprep.subr.mxu0 0.0
    %911 = vmatpush1.msra.mxu0 0.0
    %912 = vmatprep.subr.mxu0 0.0
    %913 = vmatpush1.msra.mxu0 0.0
    %914 = vmatprep.subr.mxu0 0.0
    %915 = vmatpush1.msra.mxu0 0.0
    %916 = vmatprep.subr.mxu0 0.0
    %917 = vmatpush1.msra.mxu0 0.0
    %918 = vmatprep.subr.mxu0 0.0
    %919 = vmatpush1.msra.mxu0 0.0
    %920 = vmatprep.subr.mxu0 0.0
    %921 = vmatpush1.msra.mxu0 0.0
    %922 = vmatprep.subr.mxu0 0.0
    %923 = vmatpush1.msra.mxu0 0.0
    %924 = vmatprep.subr.mxu0 0.0
    %925 = vmatpush1.msra.mxu0 0.0
    %926 = vmatprep.subr.mxu0 0.0
    %927 = vmatpush1.msra.mxu0 0.0
    %928 = vmatprep.subr.mxu0 0.0
    %929 = vmatpush1.msra.mxu0 0.0
    %930 = vmatprep.subr.mxu0 0.0
    %931 = vmatpush1.msra.mxu0 0.0
    %932 = vmatprep.subr.mxu0 0.0
    %933 = vmatpush1.msra.mxu0 0.0
    %934 = vmatprep.subr.mxu0 0.0
    %935 = vmatpush1.msra.mxu0 %v415
    %936 = vmatprep.subr.mxu0 0.0
    %937 = vmatpush1.msra.mxu0 %v414
    %938 = vmatprep.subr.mxu0 0.0
    %939 = vmatpush1.msra.mxu0 %v413
    %940 = vmatprep.subr.mxu0 0.0
    %941 = vmatpush1.msra.mxu0 %v412
    %942 = vmatprep.subr.mxu0 0.0
    %943 = vmatpush2.msra.mxu0 0.0
    %944 = vmatprep.subr.mxu0 0.0
    %945 = vmatpush2.msra.mxu0 0.0
    %946 = vmatprep.subr.mxu0 0.0
    %947 = vmatpush2.msra.mxu0 0.0
    %948 = vmatprep.subr.mxu0 0.0
    %949 = vmatpush2.msra.mxu0 0.0
    %950 = vmatprep.subr.mxu0 0.0
    %951 = vmatpush2.msra.mxu0 0.0
    %952 = vmatprep.subr.mxu0 0.0
    %953 = vmatpush2.msra.mxu0 0.0
    %954 = vmatprep.subr.mxu0 0.0
    %955 = vmatpush2.msra.mxu0 0.0
    %956 = vmatprep.subr.mxu0 0.0
    %957 = vmatpush2.msra.mxu0 0.0
    %958 = vmatprep.subr.mxu0 0.0
    %959 = vmatpush2.msra.mxu0 0.0
    %960 = vmatprep.subr.mxu0 0.0
    %961 = vmatpush2.msra.mxu0 0.0
    %962 = vmatprep.subr.mxu0 0.0
    %963 = vmatpush2.msra.mxu0 0.0
    %964 = vmatprep.subr.mxu0 0.0
    %965 = vmatpush2.msra.mxu0 0.0
    %966 = vmatprep.subr.mxu0 0.0
    %967 = vmatpush2.msra.mxu0 0.0
    %968 = vmatprep.subr.mxu0 0.0
    %969 = vmatpush2.msra.mxu0 0.0
    %970 = vmatprep.subr.mxu0 0.0
    %971 = vmatpush2.msra.mxu0 0.0
    %972 = vmatprep.subr.mxu0 0.0
    %973 = vmatpush2.msra.mxu0 0.0
    %974 = vmatprep.mubr.f32.mxu0 0.0
    %975 = vmatmul.mubr.f32.gmra.mxu0 %v905
    %v976 = vpop.f32.mrf.mxu0
    %v977 = vadd.f32 0.0, %v976
    %v978 = vpop.f32.mrf.mxu0
    %979 = vmatprep.mubr.f32.mxu0 0.0
    %980 = vmatmul.mubr.f32.gmra.mxu0 %v908
    %v981 = vpop.f32.mrf.mxu0
    %v982 = vadd.f32 0.0, %v981
    %v983 = vpop.f32.mrf.mxu0
    %984 = vdwg.mxu0
    %v985 = vadd.f32 %v902, %v977
    %v986 = vadd.f32 %v903, %v982
    %v987 = vmul.f32 %v896, 0.7
    %v988 = vmul.f32 %v897, 0.7
    %v989 = vtanh.pop %v985
    %v990 = vtanh.pop %v986
    %v991 = vmul.f32 %v989, 0.3
    %v992 = vmul.f32 %v990, 0.3
    %v993 = vadd.f32 %v987, %v991
    %v994 = vadd.f32 %v988, %v992
    %s995 = scalar_lea.vmem %s4, 80
    %996 = vst.msk [vmem:[%s995] sm:$0xff] %vm379, %v993
    %997 = vst.msk [vmem:[%s995 + $0x8] sm:$0xff] %vm379, %v994
    %s998 = scalar_lea.vmem [#allocation2], 96
    %v999 = vld [vmem:[%s998] sm:$0xff]
    %v1000 = vld [vmem:[%s998 + $0x8] sm:$0xff]
    %v1002 = vsel %vm379, %v993, 0
    %v1005 = vsel %vm379, %v994, 0
    %1007 = vmatprep.subr.mxu0 0.0
    %1008 = vmatpush1.msra.mxu0 0.0
    %1009 = vmatprep.subr.mxu0 0.0
    %1010 = vmatpush1.msra.mxu0 0.0
    %1011 = vmatprep.subr.mxu0 0.0
    %1012 = vmatpush1.msra.mxu0 0.0
    %1013 = vmatprep.subr.mxu0 0.0
    %1014 = vmatpush1.msra.mxu0 0.0
    %1015 = vmatprep.subr.mxu0 0.0
    %1016 = vmatpush1.msra.mxu0 0.0
    %1017 = vmatprep.subr.mxu0 0.0
    %1018 = vmatpush1.msra.mxu0 0.0
    %1019 = vmatprep.subr.mxu0 0.0
    %1020 = vmatpush1.msra.mxu0 0.0
    %1021 = vmatprep.subr.mxu0 0.0
    %1022 = vmatpush1.msra.mxu0 0.0
    %1023 = vmatprep.subr.mxu0 0.0
    %1024 = vmatpush1.msra.mxu0 0.0
    %1025 = vmatprep.subr.mxu0 0.0
    %1026 = vmatpush1.msra.mxu0 0.0
    %1027 = vmatprep.subr.mxu0 0.0
    %1028 = vmatpush1.msra.mxu0 0.0
    %1029 = vmatprep.subr.mxu0 0.0
    %1030 = vmatpush1.msra.mxu0 0.0
    %1031 = vmatprep.subr.mxu0 0.0
    %1032 = vmatpush1.msra.mxu0 %v415
    %1033 = vmatprep.subr.mxu0 0.0
    %1034 = vmatpush1.msra.mxu0 %v414
    %1035 = vmatprep.subr.mxu0 0.0
    %1036 = vmatpush1.msra.mxu0 %v413
    %1037 = vmatprep.subr.mxu0 0.0
    %1038 = vmatpush1.msra.mxu0 %v412
    %1039 = vmatprep.subr.mxu0 0.0
    %1040 = vmatpush2.msra.mxu0 0.0
    %1041 = vmatprep.subr.mxu0 0.0
    %1042 = vmatpush2.msra.mxu0 0.0
    %1043 = vmatprep.subr.mxu0 0.0
    %1044 = vmatpush2.msra.mxu0 0.0
    %1045 = vmatprep.subr.mxu0 0.0
    %1046 = vmatpush2.msra.mxu0 0.0
    %1047 = vmatprep.subr.mxu0 0.0
    %1048 = vmatpush2.msra.mxu0 0.0
    %1049 = vmatprep.subr.mxu0 0.0
    %1050 = vmatpush2.msra.mxu0 0.0
    %1051 = vmatprep.subr.mxu0 0.0
    %1052 = vmatpush2.msra.mxu0 0.0
    %1053 = vmatprep.subr.mxu0 0.0
    %1054 = vmatpush2.msra.mxu0 0.0
    %1055 = vmatprep.subr.mxu0 0.0
    %1056 = vmatpush2.msra.mxu0 0.0
    %1057 = vmatprep.subr.mxu0 0.0
    %1058 = vmatpush2.msra.mxu0 0.0
    %1059 = vmatprep.subr.mxu0 0.0
    %1060 = vmatpush2.msra.mxu0 0.0
    %1061 = vmatprep.subr.mxu0 0.0
    %1062 = vmatpush2.msra.mxu0 0.0
    %1063 = vmatprep.subr.mxu0 0.0
    %1064 = vmatpush2.msra.mxu0 0.0
    %1065 = vmatprep.subr.mxu0 0.0
    %1066 = vmatpush2.msra.mxu0 0.0
    %1067 = vmatprep.subr.mxu0 0.0
    %1068 = vmatpush2.msra.mxu0 0.0
    %1069 = vmatprep.subr.mxu0 0.0
    %1070 = vmatpush2.msra.mxu0 0.0
    %1071 = vmatprep.mubr.f32.mxu0 0.0
    %1072 = vmatmul.mubr.f32.gmra.mxu0 %v1002
    %v1073 = vpop.f32.mrf.mxu0
    %v1074 = vadd.f32 0.0, %v1073
    %v1075 = vpop.f32.mrf.mxu0
    %1076 = vmatprep.mubr.f32.mxu0 0.0
    %1077 = vmatmul.mubr.f32.gmra.mxu0 %v1005
    %v1078 = vpop.f32.mrf.mxu0
    %v1079 = vadd.f32 0.0, %v1078
    %v1080 = vpop.f32.mrf.mxu0
    %1081 = vdwg.mxu0
    %v1082 = vadd.f32 %v999, %v1074
    %v1083 = vadd.f32 %v1000, %v1079
    %v1084 = vmul.f32 %v993, 0.7
    %v1085 = vmul.f32 %v994, 0.7
    %v1086 = vtanh.pop %v1082
    %v1087 = vtanh.pop %v1083
    %v1088 = vmul.f32 %v1086, 0.3
    %v1089 = vmul.f32 %v1087, 0.3
    %v1090 = vadd.f32 %v1084, %v1088
    %v1091 = vadd.f32 %v1085, %v1089
    %s1092 = scalar_lea.vmem %s4, 96
    %1093 = vst.msk [vmem:[%s1092] sm:$0xff] %vm379, %v1090
    %1094 = vst.msk [vmem:[%s1092 + $0x8] sm:$0xff] %vm379, %v1091
    %s1095 = scalar_lea.vmem [#allocation2], 112
    %v1096 = vld [vmem:[%s1095] sm:$0xff]
    %v1097 = vld [vmem:[%s1095 + $0x8] sm:$0xff]
    %v1099 = vsel %vm379, %v1090, 0
    %v1102 = vsel %vm379, %v1091, 0
    %1104 = vmatprep.subr.mxu0 0.0
    %1105 = vmatpush1.msra.mxu0 0.0
    %1106 = vmatprep.subr.mxu0 0.0
    %1107 = vmatpush1.msra.mxu0 0.0
    %1108 = vmatprep.subr.mxu0 0.0
    %1109 = vmatpush1.msra.mxu0 0.0
    %1110 = vmatprep.subr.mxu0 0.0
    %1111 = vmatpush1.msra.mxu0 0.0
    %1112 = vmatprep.subr.mxu0 0.0
    %1113 = vmatpush1.msra.mxu0 0.0
    %1114 = vmatprep.subr.mxu0 0.0
    %1115 = vmatpush1.msra.mxu0 0.0
    %1116 = vmatprep.subr.mxu0 0.0
    %1117 = vmatpush1.msra.mxu0 0.0
    %1118 = vmatprep.subr.mxu0 0.0
    %1119 = vmatpush1.msra.mxu0 0.0
    %1120 = vmatprep.subr.mxu0 0.0
    %1121 = vmatpush1.msra.mxu0 0.0
    %1122 = vmatprep.subr.mxu0 0.0
    %1123 = vmatpush1.msra.mxu0 0.0
    %1124 = vmatprep.subr.mxu0 0.0
    %1125 = vmatpush1.msra.mxu0 0.0
    %1126 = vmatprep.subr.mxu0 0.0
    %1127 = vmatpush1.msra.mxu0 0.0
    %1128 = vmatprep.subr.mxu0 0.0
    %1129 = vmatpush1.msra.mxu0 %v415
    %1130 = vmatprep.subr.mxu0 0.0
    %1131 = vmatpush1.msra.mxu0 %v414
    %1132 = vmatprep.subr.mxu0 0.0
    %1133 = vmatpush1.msra.mxu0 %v413
    %1134 = vmatprep.subr.mxu0 0.0
    %1135 = vmatpush1.msra.mxu0 %v412
    %1136 = vmatprep.subr.mxu0 0.0
    %1137 = vmatpush2.msra.mxu0 0.0
    %1138 = vmatprep.subr.mxu0 0.0
    %1139 = vmatpush2.msra.mxu0 0.0
    %1140 = vmatprep.subr.mxu0 0.0
    %1141 = vmatpush2.msra.mxu0 0.0
    %1142 = vmatprep.subr.mxu0 0.0
    %1143 = vmatpush2.msra.mxu0 0.0
    %1144 = vmatprep.subr.mxu0 0.0
    %1145 = vmatpush2.msra.mxu0 0.0
    %1146 = vmatprep.subr.mxu0 0.0
    %1147 = vmatpush2.msra.mxu0 0.0
    %1148 = vmatprep.subr.mxu0 0.0
    %1149 = vmatpush2.msra.mxu0 0.0
    %1150 = vmatprep.subr.mxu0 0.0
    %1151 = vmatpush2.msra.mxu0 0.0
    %1152 = vmatprep.subr.mxu0 0.0
    %1153 = vmatpush2.msra.mxu0 0.0
    %1154 = vmatprep.subr.mxu0 0.0
    %1155 = vmatpush2.msra.mxu0 0.0
    %1156 = vmatprep.subr.mxu0 0.0
    %1157 = vmatpush2.msra.mxu0 0.0
    %1158 = vmatprep.subr.mxu0 0.0
    %1159 = vmatpush2.msra.mxu0 0.0
    %1160 = vmatprep.subr.mxu0 0.0
    %1161 = vmatpush2.msra.mxu0 0.0
    %1162 = vmatprep.subr.mxu0 0.0
    %1163 = vmatpush2.msra.mxu0 0.0
    %1164 = vmatprep.subr.mxu0 0.0
    %1165 = vmatpush2.msra.mxu0 0.0
    %1166 = vmatprep.subr.mxu0 0.0
    %1167 = vmatpush2.msra.mxu0 0.0
    %1168 = vmatprep.mubr.f32.mxu0 0.0
    %1169 = vmatmul.mubr.f32.gmra.mxu0 %v1099
    %v1170 = vpop.f32.mrf.mxu0
    %v1171 = vadd.f32 0.0, %v1170
    %v1172 = vpop.f32.mrf.mxu0
    %1173 = vmatprep.mubr.f32.mxu0 0.0
    %1174 = vmatmul.mubr.f32.gmra.mxu0 %v1102
    %v1175 = vpop.f32.mrf.mxu0
    %v1176 = vadd.f32 0.0, %v1175
    %v1177 = vpop.f32.mrf.mxu0
    %1178 = vdwg.mxu0
    %v1179 = vadd.f32 %v1096, %v1171
    %v1180 = vadd.f32 %v1097, %v1176
    %v1181 = vmul.f32 %v1090, 0.7
    %v1182 = vmul.f32 %v1091, 0.7
    %v1183 = vtanh.pop %v1179
    %v1184 = vtanh.pop %v1180
    %v1185 = vmul.f32 %v1183, 0.3
    %v1186 = vmul.f32 %v1184, 0.3
    %v1187 = vadd.f32 %v1181, %v1185
    %v1188 = vadd.f32 %v1182, %v1186
    %s1189 = scalar_lea.vmem %s4, 112
    %1190 = vst.msk [vmem:[%s1189] sm:$0xff] %vm379, %v1187
    %1191 = vst.msk [vmem:[%s1189 + $0x8] sm:$0xff] %vm379, %v1188
    %s1192 = scalar_lea.vmem [#allocation2], 128
    %v1193 = vld [vmem:[%s1192] sm:$0xff]
    %v1194 = vld [vmem:[%s1192 + $0x8] sm:$0xff]
    %v1196 = vsel %vm379, %v1187, 0
    %v1199 = vsel %vm379, %v1188, 0
    %1201 = vmatprep.subr.mxu0 0.0
    %1202 = vmatpush1.msra.mxu0 0.0
    %1203 = vmatprep.subr.mxu0 0.0
    %1204 = vmatpush1.msra.mxu0 0.0
    %1205 = vmatprep.subr.mxu0 0.0
    %1206 = vmatpush1.msra.mxu0 0.0
    %1207 = vmatprep.subr.mxu0 0.0
    %1208 = vmatpush1.msra.mxu0 0.0
    %1209 = vmatprep.subr.mxu0 0.0
    %1210 = vmatpush1.msra.mxu0 0.0
    %1211 = vmatprep.subr.mxu0 0.0
    %1212 = vmatpush1.msra.mxu0 0.0
    %1213 = vmatprep.subr.mxu0 0.0
    %1214 = vmatpush1.msra.mxu0 0.0
    %1215 = vmatprep.subr.mxu0 0.0
    %1216 = vmatpush1.msra.mxu0 0.0
    %1217 = vmatprep.subr.mxu0 0.0
    %1218 = vmatpush1.msra.mxu0 0.0
    %1219 = vmatprep.subr.mxu0 0.0
    %1220 = vmatpush1.msra.mxu0 0.0
    %1221 = vmatprep.subr.mxu0 0.0
    %1222 = vmatpush1.msra.mxu0 0.0
    %1223 = vmatprep.subr.mxu0 0.0
    %1224 = vmatpush1.msra.mxu0 0.0
    %1225 = vmatprep.subr.mxu0 0.0
    %1226 = vmatpush1.msra.mxu0 %v415
    %1227 = vmatprep.subr.mxu0 0.0
    %1228 = vmatpush1.msra.mxu0 %v414
    %1229 = vmatprep.subr.mxu0 0.0
    %1230 = vmatpush1.msra.mxu0 %v413
    %1231 = vmatprep.subr.mxu0 0.0
    %1232 = vmatpush1.msra.mxu0 %v412
    %1233 = vmatprep.subr.mxu0 0.0
    %1234 = vmatpush2.msra.mxu0 0.0
    %1235 = vmatprep.subr.mxu0 0.0
    %1236 = vmatpush2.msra.mxu0 0.0
    %1237 = vmatprep.subr.mxu0 0.0
    %1238 = vmatpush2.msra.mxu0 0.0
    %1239 = vmatprep.subr.mxu0 0.0
    %1240 = vmatpush2.msra.mxu0 0.0
    %1241 = vmatprep.subr.mxu0 0.0
    %1242 = vmatpush2.msra.mxu0 0.0
    %1243 = vmatprep.subr.mxu0 0.0
    %1244 = vmatpush2.msra.mxu0 0.0
    %1245 = vmatprep.subr.mxu0 0.0
    %1246 = vmatpush2.msra.mxu0 0.0
    %1247 = vmatprep.subr.mxu0 0.0
    %1248 = vmatpush2.msra.mxu0 0.0
    %1249 = vmatprep.subr.mxu0 0.0
    %1250 = vmatpush2.msra.mxu0 0.0
    %1251 = vmatprep.subr.mxu0 0.0
    %1252 = vmatpush2.msra.mxu0 0.0
    %1253 = vmatprep.subr.mxu0 0.0
    %1254 = vmatpush2.msra.mxu0 0.0
    %1255 = vmatprep.subr.mxu0 0.0
    %1256 = vmatpush2.msra.mxu0 0.0
    %1257 = vmatprep.subr.mxu0 0.0
    %1258 = vmatpush2.msra.mxu0 0.0
    %1259 = vmatprep.subr.mxu0 0.0
    %1260 = vmatpush2.msra.mxu0 0.0
    %1261 = vmatprep.subr.mxu0 0.0
    %1262 = vmatpush2.msra.mxu0 0.0
    %1263 = vmatprep.subr.mxu0 0.0
    %1264 = vmatpush2.msra.mxu0 0.0
    %1265 = vmatprep.mubr.f32.mxu0 0.0
    %1266 = vmatmul.mubr.f32.gmra.mxu0 %v1196
    %v1267 = vpop.f32.mrf.mxu0
    %v1268 = vadd.f32 0.0, %v1267
    %v1269 = vpop.f32.mrf.mxu0
    %1270 = vmatprep.mubr.f32.mxu0 0.0
    %1271 = vmatmul.mubr.f32.gmra.mxu0 %v1199
    %v1272 = vpop.f32.mrf.mxu0
    %v1273 = vadd.f32 0.0, %v1272
    %v1274 = vpop.f32.mrf.mxu0
    %1275 = vdwg.mxu0
    %v1276 = vadd.f32 %v1193, %v1268
    %v1277 = vadd.f32 %v1194, %v1273
    %v1278 = vmul.f32 %v1187, 0.7
    %v1279 = vmul.f32 %v1188, 0.7
    %v1280 = vtanh.pop %v1276
    %v1281 = vtanh.pop %v1277
    %v1282 = vmul.f32 %v1280, 0.3
    %v1283 = vmul.f32 %v1281, 0.3
    %v1284 = vadd.f32 %v1278, %v1282
    %v1285 = vadd.f32 %v1279, %v1283
    %s1286 = scalar_lea.vmem %s4, 128
    %1287 = vst.msk [vmem:[%s1286] sm:$0xff] %vm379, %v1284
    %1288 = vst.msk [vmem:[%s1286 + $0x8] sm:$0xff] %vm379, %v1285
    %s1289 = scalar_lea.vmem [#allocation2], 144
    %v1290 = vld [vmem:[%s1289] sm:$0xff]
    %v1291 = vld [vmem:[%s1289 + $0x8] sm:$0xff]
    %v1293 = vsel %vm379, %v1284, 0
    %v1296 = vsel %vm379, %v1285, 0
    %1298 = vmatprep.subr.mxu0 0.0
    %1299 = vmatpush1.msra.mxu0 0.0
    %1300 = vmatprep.subr.mxu0 0.0
    %1301 = vmatpush1.msra.mxu0 0.0
    %1302 = vmatprep.subr.mxu0 0.0
    %1303 = vmatpush1.msra.mxu0 0.0
    %1304 = vmatprep.subr.mxu0 0.0
    %1305 = vmatpush1.msra.mxu0 0.0
    %1306 = vmatprep.subr.mxu0 0.0
    %1307 = vmatpush1.msra.mxu0 0.0
    %1308 = vmatprep.subr.mxu0 0.0
    %1309 = vmatpush1.msra.mxu0 0.0
    %1310 = vmatprep.subr.mxu0 0.0
    %1311 = vmatpush1.msra.mxu0 0.0
    %1312 = vmatprep.subr.mxu0 0.0
    %1313 = vmatpush1.msra.mxu0 0.0
    %1314 = vmatprep.subr.mxu0 0.0
    %1315 = vmatpush1.msra.mxu0 0.0
    %1316 = vmatprep.subr.mxu0 0.0
    %1317 = vmatpush1.msra.mxu0 0.0
    %1318 = vmatprep.subr.mxu0 0.0
    %1319 = vmatpush1.msra.mxu0 0.0
    %1320 = vmatprep.subr.mxu0 0.0
    %1321 = vmatpush1.msra.mxu0 0.0
    %1322 = vmatprep.subr.mxu0 0.0
    %1323 = vmatpush1.msra.mxu0 %v415
    %1324 = vmatprep.subr.mxu0 0.0
    %1325 = vmatpush1.msra.mxu0 %v414
    %1326 = vmatprep.subr.mxu0 0.0
    %1327 = vmatpush1.msra.mxu0 %v413
    %1328 = vmatprep.subr.mxu0 0.0
    %1329 = vmatpush1.msra.mxu0 %v412
    %1330 = vmatprep.subr.mxu0 0.0
    %1331 = vmatpush2.msra.mxu0 0.0
    %1332 = vmatprep.subr.mxu0 0.0
    %1333 = vmatpush2.msra.mxu0 0.0
    %1334 = vmatprep.subr.mxu0 0.0
    %1335 = vmatpush2.msra.mxu0 0.0
    %1336 = vmatprep.subr.mxu0 0.0
    %1337 = vmatpush2.msra.mxu0 0.0
    %1338 = vmatprep.subr.mxu0 0.0
    %1339 = vmatpush2.msra.mxu0 0.0
    %1340 = vmatprep.subr.mxu0 0.0
    %1341 = vmatpush2.msra.mxu0 0.0
    %1342 = vmatprep.subr.mxu0 0.0
    %1343 = vmatpush2.msra.mxu0 0.0
    %1344 = vmatprep.subr.mxu0 0.0
    %1345 = vmatpush2.msra.mxu0 0.0
    %1346 = vmatprep.subr.mxu0 0.0
    %1347 = vmatpush2.msra.mxu0 0.0
    %1348 = vmatprep.subr.mxu0 0.0
    %1349 = vmatpush2.msra.mxu0 0.0
    %1350 = vmatprep.subr.mxu0 0.0
    %1351 = vmatpush2.msra.mxu0 0.0
    %1352 = vmatprep.subr.mxu0 0.0
    %1353 = vmatpush2.msra.mxu0 0.0
    %1354 = vmatprep.subr.mxu0 0.0
    %1355 = vmatpush2.msra.mxu0 0.0
    %1356 = vmatprep.subr.mxu0 0.0
    %1357 = vmatpush2.msra.mxu0 0.0
    %1358 = vmatprep.subr.mxu0 0.0
    %1359 = vmatpush2.msra.mxu0 0.0
    %1360 = vmatprep.subr.mxu0 0.0
    %1361 = vmatpush2.msra.mxu0 0.0
    %1362 = vmatprep.mubr.f32.mxu0 0.0
    %1363 = vmatmul.mubr.f32.gmra.mxu0 %v1293
    %v1364 = vpop.f32.mrf.mxu0
    %v1365 = vadd.f32 0.0, %v1364
    %v1366 = vpop.f32.mrf.mxu0
    %1367 = vmatprep.mubr.f32.mxu0 0.0
    %1368 = vmatmul.mubr.f32.gmra.mxu0 %v1296
    %v1369 = vpop.f32.mrf.mxu0
    %v1370 = vadd.f32 0.0, %v1369
    %v1371 = vpop.f32.mrf.mxu0
    %1372 = vdwg.mxu0
    %v1373 = vadd.f32 %v1290, %v1365
    %v1374 = vadd.f32 %v1291, %v1370
    %v1375 = vmul.f32 %v1284, 0.7
    %v1376 = vmul.f32 %v1285, 0.7
    %v1377 = vtanh.pop %v1373
    %v1378 = vtanh.pop %v1374
    %v1379 = vmul.f32 %v1377, 0.3
    %v1380 = vmul.f32 %v1378, 0.3
    %v1381 = vadd.f32 %v1375, %v1379
    %v1382 = vadd.f32 %v1376, %v1380
    %s1383 = scalar_lea.vmem %s4, 144
    %1384 = vst.msk [vmem:[%s1383] sm:$0xff] %vm379, %v1381
    %1385 = vst.msk [vmem:[%s1383 + $0x8] sm:$0xff] %vm379, %v1382
    %s1386 = scalar_lea.vmem [#allocation2], 160
    %v1387 = vld [vmem:[%s1386] sm:$0xff]
    %v1388 = vld [vmem:[%s1386 + $0x8] sm:$0xff]
    %v1390 = vsel %vm379, %v1381, 0
    %v1393 = vsel %vm379, %v1382, 0
    %1395 = vmatprep.subr.mxu0 0.0
    %1396 = vmatpush1.msra.mxu0 0.0
    %1397 = vmatprep.subr.mxu0 0.0
    %1398 = vmatpush1.msra.mxu0 0.0
    %1399 = vmatprep.subr.mxu0 0.0
    %1400 = vmatpush1.msra.mxu0 0.0
    %1401 = vmatprep.subr.mxu0 0.0
    %1402 = vmatpush1.msra.mxu0 0.0
    %1403 = vmatprep.subr.mxu0 0.0
    %1404 = vmatpush1.msra.mxu0 0.0
    %1405 = vmatprep.subr.mxu0 0.0
    %1406 = vmatpush1.msra.mxu0 0.0
    %1407 = vmatprep.subr.mxu0 0.0
    %1408 = vmatpush1.msra.mxu0 0.0
    %1409 = vmatprep.subr.mxu0 0.0
    %1410 = vmatpush1.msra.mxu0 0.0
    %1411 = vmatprep.subr.mxu0 0.0
    %1412 = vmatpush1.msra.mxu0 0.0
    %1413 = vmatprep.subr.mxu0 0.0
    %1414 = vmatpush1.msra.mxu0 0.0
    %1415 = vmatprep.subr.mxu0 0.0
    %1416 = vmatpush1.msra.mxu0 0.0
    %1417 = vmatprep.subr.mxu0 0.0
    %1418 = vmatpush1.msra.mxu0 0.0
    %1419 = vmatprep.subr.mxu0 0.0
    %1420 = vmatpush1.msra.mxu0 %v415
    %1421 = vmatprep.subr.mxu0 0.0
    %1422 = vmatpush1.msra.mxu0 %v414
    %1423 = vmatprep.subr.mxu0 0.0
    %1424 = vmatpush1.msra.mxu0 %v413
    %1425 = vmatprep.subr.mxu0 0.0
    %1426 = vmatpush1.msra.mxu0 %v412
    %1427 = vmatprep.subr.mxu0 0.0
    %1428 = vmatpush2.msra.mxu0 0.0
    %1429 = vmatprep.subr.mxu0 0.0
    %1430 = vmatpush2.msra.mxu0 0.0
    %1431 = vmatprep.subr.mxu0 0.0
    %1432 = vmatpush2.msra.mxu0 0.0
    %1433 = vmatprep.subr.mxu0 0.0
    %1434 = vmatpush2.msra.mxu0 0.0
    %1435 = vmatprep.subr.mxu0 0.0
    %1436 = vmatpush2.msra.mxu0 0.0
    %1437 = vmatprep.subr.mxu0 0.0
    %1438 = vmatpush2.msra.mxu0 0.0
    %1439 = vmatprep.subr.mxu0 0.0
    %1440 = vmatpush2.msra.mxu0 0.0
    %1441 = vmatprep.subr.mxu0 0.0
    %1442 = vmatpush2.msra.mxu0 0.0
    %1443 = vmatprep.subr.mxu0 0.0
    %1444 = vmatpush2.msra.mxu0 0.0
    %1445 = vmatprep.subr.mxu0 0.0
    %1446 = vmatpush2.msra.mxu0 0.0
    %1447 = vmatprep.subr.mxu0 0.0
    %1448 = vmatpush2.msra.mxu0 0.0
    %1449 = vmatprep.subr.mxu0 0.0
    %1450 = vmatpush2.msra.mxu0 0.0
    %1451 = vmatprep.subr.mxu0 0.0
    %1452 = vmatpush2.msra.mxu0 0.0
    %1453 = vmatprep.subr.mxu0 0.0
    %1454 = vmatpush2.msra.mxu0 0.0
    %1455 = vmatprep.subr.mxu0 0.0
    %1456 = vmatpush2.msra.mxu0 0.0
    %1457 = vmatprep.subr.mxu0 0.0
    %1458 = vmatpush2.msra.mxu0 0.0
    %1459 = vmatprep.mubr.f32.mxu0 0.0
    %1460 = vmatmul.mubr.f32.gmra.mxu0 %v1390
    %v1461 = vpop.f32.mrf.mxu0
    %v1462 = vadd.f32 0.0, %v1461
    %v1463 = vpop.f32.mrf.mxu0
    %1464 = vmatprep.mubr.f32.mxu0 0.0
    %1465 = vmatmul.mubr.f32.gmra.mxu0 %v1393
    %v1466 = vpop.f32.mrf.mxu0
    %v1467 = vadd.f32 0.0, %v1466
    %v1468 = vpop.f32.mrf.mxu0
    %1469 = vdwg.mxu0
    %v1470 = vadd.f32 %v1387, %v1462
    %v1471 = vadd.f32 %v1388, %v1467
    %v1472 = vmul.f32 %v1381, 0.7
    %v1473 = vmul.f32 %v1382, 0.7
    %v1474 = vtanh.pop %v1470
    %v1475 = vtanh.pop %v1471
    %v1476 = vmul.f32 %v1474, 0.3
    %v1477 = vmul.f32 %v1475, 0.3
    %v1478 = vadd.f32 %v1472, %v1476
    %v1479 = vadd.f32 %v1473, %v1477
    %s1480 = scalar_lea.vmem %s4, 160
    %1481 = vst.msk [vmem:[%s1480] sm:$0xff] %vm379, %v1478
    %1482 = vst.msk [vmem:[%s1480 + $0x8] sm:$0xff] %vm379, %v1479
    %s1483 = scalar_lea.vmem [#allocation2], 176
    %v1484 = vld [vmem:[%s1483] sm:$0xff]
    %v1485 = vld [vmem:[%s1483 + $0x8] sm:$0xff]
    %v1487 = vsel %vm379, %v1478, 0
    %v1490 = vsel %vm379, %v1479, 0
    %1492 = vmatprep.subr.mxu0 0.0
    %1493 = vmatpush1.msra.mxu0 0.0
    %1494 = vmatprep.subr.mxu0 0.0
    %1495 = vmatpush1.msra.mxu0 0.0
    %1496 = vmatprep.subr.mxu0 0.0
    %1497 = vmatpush1.msra.mxu0 0.0
    %1498 = vmatprep.subr.mxu0 0.0
    %1499 = vmatpush1.msra.mxu0 0.0
    %1500 = vmatprep.subr.mxu0 0.0
    %1501 = vmatpush1.msra.mxu0 0.0
    %1502 = vmatprep.subr.mxu0 0.0
    %1503 = vmatpush1.msra.mxu0 0.0
    %1504 = vmatprep.subr.mxu0 0.0
    %1505 = vmatpush1.msra.mxu0 0.0
    %1506 = vmatprep.subr.mxu0 0.0
    %1507 = vmatpush1.msra.mxu0 0.0
    %1508 = vmatprep.subr.mxu0 0.0
    %1509 = vmatpush1.msra.mxu0 0.0
    %1510 = vmatprep.subr.mxu0 0.0
    %1511 = vmatpush1.msra.mxu0 0.0
    %1512 = vmatprep.subr.mxu0 0.0
    %1513 = vmatpush1.msra.mxu0 0.0
    %1514 = vmatprep.subr.mxu0 0.0
    %1515 = vmatpush1.msra.mxu0 0.0
    %1516 = vmatprep.subr.mxu0 0.0
    %1517 = vmatpush1.msra.mxu0 %v415
    %1518 = vmatprep.subr.mxu0 0.0
    %1519 = vmatpush1.msra.mxu0 %v414
    %1520 = vmatprep.subr.mxu0 0.0
    %1521 = vmatpush1.msra.mxu0 %v413
    %1522 = vmatprep.subr.mxu0 0.0
    %1523 = vmatpush1.msra.mxu0 %v412
    %1524 = vmatprep.subr.mxu0 0.0
    %1525 = vmatpush2.msra.mxu0 0.0
    %1526 = vmatprep.subr.mxu0 0.0
    %1527 = vmatpush2.msra.mxu0 0.0
    %1528 = vmatprep.subr.mxu0 0.0
    %1529 = vmatpush2.msra.mxu0 0.0
    %1530 = vmatprep.subr.mxu0 0.0
    %1531 = vmatpush2.msra.mxu0 0.0
    %1532 = vmatprep.subr.mxu0 0.0
    %1533 = vmatpush2.msra.mxu0 0.0
    %1534 = vmatprep.subr.mxu0 0.0
    %1535 = vmatpush2.msra.mxu0 0.0
    %1536 = vmatprep.subr.mxu0 0.0
    %1537 = vmatpush2.msra.mxu0 0.0
    %1538 = vmatprep.subr.mxu0 0.0
    %1539 = vmatpush2.msra.mxu0 0.0
    %1540 = vmatprep.subr.mxu0 0.0
    %1541 = vmatpush2.msra.mxu0 0.0
    %1542 = vmatprep.subr.mxu0 0.0
    %1543 = vmatpush2.msra.mxu0 0.0
    %1544 = vmatprep.subr.mxu0 0.0
    %1545 = vmatpush2.msra.mxu0 0.0
    %1546 = vmatprep.subr.mxu0 0.0
    %1547 = vmatpush2.msra.mxu0 0.0
    %1548 = vmatprep.subr.mxu0 0.0
    %1549 = vmatpush2.msra.mxu0 0.0
    %1550 = vmatprep.subr.mxu0 0.0
    %1551 = vmatpush2.msra.mxu0 0.0
    %1552 = vmatprep.subr.mxu0 0.0
    %1553 = vmatpush2.msra.mxu0 0.0
    %1554 = vmatprep.subr.mxu0 0.0
    %1555 = vmatpush2.msra.mxu0 0.0
    %1556 = vmatprep.mubr.f32.mxu0 0.0
    %1557 = vmatmul.mubr.f32.gmra.mxu0 %v1487
    %v1558 = vpop.f32.mrf.mxu0
    %v1559 = vadd.f32 0.0, %v1558
    %v1560 = vpop.f32.mrf.mxu0
    %1561 = vmatprep.mubr.f32.mxu0 0.0
    %1562 = vmatmul.mubr.f32.gmra.mxu0 %v1490
    %v1563 = vpop.f32.mrf.mxu0
    %v1564 = vadd.f32 0.0, %v1563
    %v1565 = vpop.f32.mrf.mxu0
    %1566 = vdwg.mxu0
    %v1567 = vadd.f32 %v1484, %v1559
    %v1568 = vadd.f32 %v1485, %v1564
    %v1569 = vmul.f32 %v1478, 0.7
    %v1570 = vmul.f32 %v1479, 0.7
    %v1571 = vtanh.pop %v1567
    %v1572 = vtanh.pop %v1568
    %v1573 = vmul.f32 %v1571, 0.3
    %v1574 = vmul.f32 %v1572, 0.3
    %v1575 = vadd.f32 %v1569, %v1573
    %v1576 = vadd.f32 %v1570, %v1574
    %s1577 = scalar_lea.vmem %s4, 176
    %1578 = vst.msk [vmem:[%s1577] sm:$0xff] %vm379, %v1575
    %1579 = vst.msk [vmem:[%s1577 + $0x8] sm:$0xff] %vm379, %v1576
    %s1580 = scalar_lea.vmem [#allocation2], 192
    %v1581 = vld [vmem:[%s1580] sm:$0xff]
    %v1582 = vld [vmem:[%s1580 + $0x8] sm:$0xff]
    %v1584 = vsel %vm379, %v1575, 0
    %v1587 = vsel %vm379, %v1576, 0
    %1589 = vmatprep.subr.mxu0 0.0
    %1590 = vmatpush1.msra.mxu0 0.0
    %1591 = vmatprep.subr.mxu0 0.0
    %1592 = vmatpush1.msra.mxu0 0.0
    %1593 = vmatprep.subr.mxu0 0.0
    %1594 = vmatpush1.msra.mxu0 0.0
    %1595 = vmatprep.subr.mxu0 0.0
    %1596 = vmatpush1.msra.mxu0 0.0
    %1597 = vmatprep.subr.mxu0 0.0
    %1598 = vmatpush1.msra.mxu0 0.0
    %1599 = vmatprep.subr.mxu0 0.0
    %1600 = vmatpush1.msra.mxu0 0.0
    %1601 = vmatprep.subr.mxu0 0.0
    %1602 = vmatpush1.msra.mxu0 0.0
    %1603 = vmatprep.subr.mxu0 0.0
    %1604 = vmatpush1.msra.mxu0 0.0
    %1605 = vmatprep.subr.mxu0 0.0
    %1606 = vmatpush1.msra.mxu0 0.0
    %1607 = vmatprep.subr.mxu0 0.0
    %1608 = vmatpush1.msra.mxu0 0.0
    %1609 = vmatprep.subr.mxu0 0.0
    %1610 = vmatpush1.msra.mxu0 0.0
    %1611 = vmatprep.subr.mxu0 0.0
    %1612 = vmatpush1.msra.mxu0 0.0
    %1613 = vmatprep.subr.mxu0 0.0
    %1614 = vmatpush1.msra.mxu0 %v415
    %1615 = vmatprep.subr.mxu0 0.0
    %1616 = vmatpush1.msra.mxu0 %v414
    %1617 = vmatprep.subr.mxu0 0.0
    %1618 = vmatpush1.msra.mxu0 %v413
    %1619 = vmatprep.subr.mxu0 0.0
    %1620 = vmatpush1.msra.mxu0 %v412
    %1621 = vmatprep.subr.mxu0 0.0
    %1622 = vmatpush2.msra.mxu0 0.0
    %1623 = vmatprep.subr.mxu0 0.0
    %1624 = vmatpush2.msra.mxu0 0.0
    %1625 = vmatprep.subr.mxu0 0.0
    %1626 = vmatpush2.msra.mxu0 0.0
    %1627 = vmatprep.subr.mxu0 0.0
    %1628 = vmatpush2.msra.mxu0 0.0
    %1629 = vmatprep.subr.mxu0 0.0
    %1630 = vmatpush2.msra.mxu0 0.0
    %1631 = vmatprep.subr.mxu0 0.0
    %1632 = vmatpush2.msra.mxu0 0.0
    %1633 = vmatprep.subr.mxu0 0.0
    %1634 = vmatpush2.msra.mxu0 0.0
    %1635 = vmatprep.subr.mxu0 0.0
    %1636 = vmatpush2.msra.mxu0 0.0
    %1637 = vmatprep.subr.mxu0 0.0
    %1638 = vmatpush2.msra.mxu0 0.0
    %1639 = vmatprep.subr.mxu0 0.0
    %1640 = vmatpush2.msra.mxu0 0.0
    %1641 = vmatprep.subr.mxu0 0.0
    %1642 = vmatpush2.msra.mxu0 0.0
    %1643 = vmatprep.subr.mxu0 0.0
    %1644 = vmatpush2.msra.mxu0 0.0
    %1645 = vmatprep.subr.mxu0 0.0
    %1646 = vmatpush2.msra.mxu0 0.0
    %1647 = vmatprep.subr.mxu0 0.0
    %1648 = vmatpush2.msra.mxu0 0.0
    %1649 = vmatprep.subr.mxu0 0.0
    %1650 = vmatpush2.msra.mxu0 0.0
    %1651 = vmatprep.subr.mxu0 0.0
    %1652 = vmatpush2.msra.mxu0 0.0
    %1653 = vmatprep.mubr.f32.mxu0 0.0
    %1654 = vmatmul.mubr.f32.gmra.mxu0 %v1584
    %v1655 = vpop.f32.mrf.mxu0
    %v1656 = vadd.f32 0.0, %v1655
    %v1657 = vpop.f32.mrf.mxu0
    %1658 = vmatprep.mubr.f32.mxu0 0.0
    %1659 = vmatmul.mubr.f32.gmra.mxu0 %v1587
    %v1660 = vpop.f32.mrf.mxu0
    %v1661 = vadd.f32 0.0, %v1660
    %v1662 = vpop.f32.mrf.mxu0
    %1663 = vdwg.mxu0
    %v1664 = vadd.f32 %v1581, %v1656
    %v1665 = vadd.f32 %v1582, %v1661
    %v1666 = vmul.f32 %v1575, 0.7
    %v1667 = vmul.f32 %v1576, 0.7
    %v1668 = vtanh.pop %v1664
    %v1669 = vtanh.pop %v1665
    %v1670 = vmul.f32 %v1668, 0.3
    %v1671 = vmul.f32 %v1669, 0.3
    %v1672 = vadd.f32 %v1666, %v1670
    %v1673 = vadd.f32 %v1667, %v1671
    %s1674 = scalar_lea.vmem %s4, 192
    %1675 = vst.msk [vmem:[%s1674] sm:$0xff] %vm379, %v1672
    %1676 = vst.msk [vmem:[%s1674 + $0x8] sm:$0xff] %vm379, %v1673
    %s1677 = scalar_lea.vmem [#allocation2], 208
    %v1678 = vld [vmem:[%s1677] sm:$0xff]
    %v1679 = vld [vmem:[%s1677 + $0x8] sm:$0xff]
    %v1681 = vsel %vm379, %v1672, 0
    %v1684 = vsel %vm379, %v1673, 0
    %1686 = vmatprep.subr.mxu0 0.0
    %1687 = vmatpush1.msra.mxu0 0.0
    %1688 = vmatprep.subr.mxu0 0.0
    %1689 = vmatpush1.msra.mxu0 0.0
    %1690 = vmatprep.subr.mxu0 0.0
    %1691 = vmatpush1.msra.mxu0 0.0
    %1692 = vmatprep.subr.mxu0 0.0
    %1693 = vmatpush1.msra.mxu0 0.0
    %1694 = vmatprep.subr.mxu0 0.0
    %1695 = vmatpush1.msra.mxu0 0.0
    %1696 = vmatprep.subr.mxu0 0.0
    %1697 = vmatpush1.msra.mxu0 0.0
    %1698 = vmatprep.subr.mxu0 0.0
    %1699 = vmatpush1.msra.mxu0 0.0
    %1700 = vmatprep.subr.mxu0 0.0
    %1701 = vmatpush1.msra.mxu0 0.0
    %1702 = vmatprep.subr.mxu0 0.0
    %1703 = vmatpush1.msra.mxu0 0.0
    %1704 = vmatprep.subr.mxu0 0.0
    %1705 = vmatpush1.msra.mxu0 0.0
    %1706 = vmatprep.subr.mxu0 0.0
    %1707 = vmatpush1.msra.mxu0 0.0
    %1708 = vmatprep.subr.mxu0 0.0
    %1709 = vmatpush1.msra.mxu0 0.0
    %1710 = vmatprep.subr.mxu0 0.0
    %1711 = vmatpush1.msra.mxu0 %v415
    %1712 = vmatprep.subr.mxu0 0.0
    %1713 = vmatpush1.msra.mxu0 %v414
    %1714 = vmatprep.subr.mxu0 0.0
    %1715 = vmatpush1.msra.mxu0 %v413
    %1716 = vmatprep.subr.mxu0 0.0
    %1717 = vmatpush1.msra.mxu0 %v412
    %1718 = vmatprep.subr.mxu0 0.0
    %1719 = vmatpush2.msra.mxu0 0.0
    %1720 = vmatprep.subr.mxu0 0.0
    %1721 = vmatpush2.msra.mxu0 0.0
    %1722 = vmatprep.subr.mxu0 0.0
    %1723 = vmatpush2.msra.mxu0 0.0
    %1724 = vmatprep.subr.mxu0 0.0
    %1725 = vmatpush2.msra.mxu0 0.0
    %1726 = vmatprep.subr.mxu0 0.0
    %1727 = vmatpush2.msra.mxu0 0.0
    %1728 = vmatprep.subr.mxu0 0.0
    %1729 = vmatpush2.msra.mxu0 0.0
    %1730 = vmatprep.subr.mxu0 0.0
    %1731 = vmatpush2.msra.mxu0 0.0
    %1732 = vmatprep.subr.mxu0 0.0
    %1733 = vmatpush2.msra.mxu0 0.0
    %1734 = vmatprep.subr.mxu0 0.0
    %1735 = vmatpush2.msra.mxu0 0.0
    %1736 = vmatprep.subr.mxu0 0.0
    %1737 = vmatpush2.msra.mxu0 0.0
    %1738 = vmatprep.subr.mxu0 0.0
    %1739 = vmatpush2.msra.mxu0 0.0
    %1740 = vmatprep.subr.mxu0 0.0
    %1741 = vmatpush2.msra.mxu0 0.0
    %1742 = vmatprep.subr.mxu0 0.0
    %1743 = vmatpush2.msra.mxu0 0.0
    %1744 = vmatprep.subr.mxu0 0.0
    %1745 = vmatpush2.msra.mxu0 0.0
    %1746 = vmatprep.subr.mxu0 0.0
    %1747 = vmatpush2.msra.mxu0 0.0
    %1748 = vmatprep.subr.mxu0 0.0
    %1749 = vmatpush2.msra.mxu0 0.0
    %1750 = vmatprep.mubr.f32.mxu0 0.0
    %1751 = vmatmul.mubr.f32.gmra.mxu0 %v1681
    %v1752 = vpop.f32.mrf.mxu0
    %v1753 = vadd.f32 0.0, %v1752
    %v1754 = vpop.f32.mrf.mxu0
    %1755 = vmatprep.mubr.f32.mxu0 0.0
    %1756 = vmatmul.mubr.f32.gmra.mxu0 %v1684
    %v1757 = vpop.f32.mrf.mxu0
    %v1758 = vadd.f32 0.0, %v1757
    %v1759 = vpop.f32.mrf.mxu0
    %1760 = vdwg.mxu0
    %v1761 = vadd.f32 %v1678, %v1753
    %v1762 = vadd.f32 %v1679, %v1758
    %v1763 = vmul.f32 %v1672, 0.7
    %v1764 = vmul.f32 %v1673, 0.7
    %v1765 = vtanh.pop %v1761
    %v1766 = vtanh.pop %v1762
    %v1767 = vmul.f32 %v1765, 0.3
    %v1768 = vmul.f32 %v1766, 0.3
    %v1769 = vadd.f32 %v1763, %v1767
    %v1770 = vadd.f32 %v1764, %v1768
    %s1771 = scalar_lea.vmem %s4, 208
    %1772 = vst.msk [vmem:[%s1771] sm:$0xff] %vm379, %v1769
    %1773 = vst.msk [vmem:[%s1771 + $0x8] sm:$0xff] %vm379, %v1770
    %s1774 = scalar_lea.vmem [#allocation2], 224
    %v1775 = vld [vmem:[%s1774] sm:$0xff]
    %v1776 = vld [vmem:[%s1774 + $0x8] sm:$0xff]
    %v1778 = vsel %vm379, %v1769, 0
    %v1781 = vsel %vm379, %v1770, 0
    %1783 = vmatprep.subr.mxu0 0.0
    %1784 = vmatpush1.msra.mxu0 0.0
    %1785 = vmatprep.subr.mxu0 0.0
    %1786 = vmatpush1.msra.mxu0 0.0
    %1787 = vmatprep.subr.mxu0 0.0
    %1788 = vmatpush1.msra.mxu0 0.0
    %1789 = vmatprep.subr.mxu0 0.0
    %1790 = vmatpush1.msra.mxu0 0.0
    %1791 = vmatprep.subr.mxu0 0.0
    %1792 = vmatpush1.msra.mxu0 0.0
    %1793 = vmatprep.subr.mxu0 0.0
    %1794 = vmatpush1.msra.mxu0 0.0
    %1795 = vmatprep.subr.mxu0 0.0
    %1796 = vmatpush1.msra.mxu0 0.0
    %1797 = vmatprep.subr.mxu0 0.0
    %1798 = vmatpush1.msra.mxu0 0.0
    %1799 = vmatprep.subr.mxu0 0.0
    %1800 = vmatpush1.msra.mxu0 0.0
    %1801 = vmatprep.subr.mxu0 0.0
    %1802 = vmatpush1.msra.mxu0 0.0
    %1803 = vmatprep.subr.mxu0 0.0
    %1804 = vmatpush1.msra.mxu0 0.0
    %1805 = vmatprep.subr.mxu0 0.0
    %1806 = vmatpush1.msra.mxu0 0.0
    %1807 = vmatprep.subr.mxu0 0.0
    %1808 = vmatpush1.msra.mxu0 %v415
    %1809 = vmatprep.subr.mxu0 0.0
    %1810 = vmatpush1.msra.mxu0 %v414
    %1811 = vmatprep.subr.mxu0 0.0
    %1812 = vmatpush1.msra.mxu0 %v413
    %1813 = vmatprep.subr.mxu0 0.0
    %1814 = vmatpush1.msra.mxu0 %v412
    %1815 = vmatprep.subr.mxu0 0.0
    %1816 = vmatpush2.msra.mxu0 0.0
    %1817 = vmatprep.subr.mxu0 0.0
    %1818 = vmatpush2.msra.mxu0 0.0
    %1819 = vmatprep.subr.mxu0 0.0
    %1820 = vmatpush2.msra.mxu0 0.0
    %1821 = vmatprep.subr.mxu0 0.0
    %1822 = vmatpush2.msra.mxu0 0.0
    %1823 = vmatprep.subr.mxu0 0.0
    %1824 = vmatpush2.msra.mxu0 0.0
    %1825 = vmatprep.subr.mxu0 0.0
    %1826 = vmatpush2.msra.mxu0 0.0
    %1827 = vmatprep.subr.mxu0 0.0
    %1828 = vmatpush2.msra.mxu0 0.0
    %1829 = vmatprep.subr.mxu0 0.0
    %1830 = vmatpush2.msra.mxu0 0.0
    %1831 = vmatprep.subr.mxu0 0.0
    %1832 = vmatpush2.msra.mxu0 0.0
    %1833 = vmatprep.subr.mxu0 0.0
    %1834 = vmatpush2.msra.mxu0 0.0
    %1835 = vmatprep.subr.mxu0 0.0
    %1836 = vmatpush2.msra.mxu0 0.0
    %1837 = vmatprep.subr.mxu0 0.0
    %1838 = vmatpush2.msra.mxu0 0.0
    %1839 = vmatprep.subr.mxu0 0.0
    %1840 = vmatpush2.msra.mxu0 0.0
    %1841 = vmatprep.subr.mxu0 0.0
    %1842 = vmatpush2.msra.mxu0 0.0
    %1843 = vmatprep.subr.mxu0 0.0
    %1844 = vmatpush2.msra.mxu0 0.0
    %1845 = vmatprep.subr.mxu0 0.0
    %1846 = vmatpush2.msra.mxu0 0.0
    %1847 = vmatprep.mubr.f32.mxu0 0.0
    %1848 = vmatmul.mubr.f32.gmra.mxu0 %v1778
    %v1849 = vpop.f32.mrf.mxu0
    %v1850 = vadd.f32 0.0, %v1849
    %v1851 = vpop.f32.mrf.mxu0
    %1852 = vmatprep.mubr.f32.mxu0 0.0
    %1853 = vmatmul.mubr.f32.gmra.mxu0 %v1781
    %v1854 = vpop.f32.mrf.mxu0
    %v1855 = vadd.f32 0.0, %v1854
    %v1856 = vpop.f32.mrf.mxu0
    %1857 = vdwg.mxu0
    %v1858 = vadd.f32 %v1775, %v1850
    %v1859 = vadd.f32 %v1776, %v1855
    %v1860 = vmul.f32 %v1769, 0.7
    %v1861 = vmul.f32 %v1770, 0.7
    %v1862 = vtanh.pop %v1858
    %v1863 = vtanh.pop %v1859
    %v1864 = vmul.f32 %v1862, 0.3
    %v1865 = vmul.f32 %v1863, 0.3
    %v1866 = vadd.f32 %v1860, %v1864
    %v1867 = vadd.f32 %v1861, %v1865
    %s1868 = scalar_lea.vmem %s4, 224
    %1869 = vst.msk [vmem:[%s1868] sm:$0xff] %vm379, %v1866
    %1870 = vst.msk [vmem:[%s1868 + $0x8] sm:$0xff] %vm379, %v1867
    %s1871 = scalar_lea.vmem [#allocation2], 240
    %v1872 = vld [vmem:[%s1871] sm:$0xff]
    %v1873 = vld [vmem:[%s1871 + $0x8] sm:$0xff]
    %v1875 = vsel %vm379, %v1866, 0
    %v1878 = vsel %vm379, %v1867, 0
    %1880 = vmatprep.subr.mxu0 0.0
    %1881 = vmatpush1.msra.mxu0 0.0
    %1882 = vmatprep.subr.mxu0 0.0
    %1883 = vmatpush1.msra.mxu0 0.0
    %1884 = vmatprep.subr.mxu0 0.0
    %1885 = vmatpush1.msra.mxu0 0.0
    %1886 = vmatprep.subr.mxu0 0.0
    %1887 = vmatpush1.msra.mxu0 0.0
    %1888 = vmatprep.subr.mxu0 0.0
    %1889 = vmatpush1.msra.mxu0 0.0
    %1890 = vmatprep.subr.mxu0 0.0
    %1891 = vmatpush1.msra.mxu0 0.0
    %1892 = vmatprep.subr.mxu0 0.0
    %1893 = vmatpush1.msra.mxu0 0.0
    %1894 = vmatprep.subr.mxu0 0.0
    %1895 = vmatpush1.msra.mxu0 0.0
    %1896 = vmatprep.subr.mxu0 0.0
    %1897 = vmatpush1.msra.mxu0 0.0
    %1898 = vmatprep.subr.mxu0 0.0
    %1899 = vmatpush1.msra.mxu0 0.0
    %1900 = vmatprep.subr.mxu0 0.0
    %1901 = vmatpush1.msra.mxu0 0.0
    %1902 = vmatprep.subr.mxu0 0.0
    %1903 = vmatpush1.msra.mxu0 0.0
    %1904 = vmatprep.subr.mxu0 0.0
    %1905 = vmatpush1.msra.mxu0 %v415
    %1906 = vmatprep.subr.mxu0 0.0
    %1907 = vmatpush1.msra.mxu0 %v414
    %1908 = vmatprep.subr.mxu0 0.0
    %1909 = vmatpush1.msra.mxu0 %v413
    %1910 = vmatprep.subr.mxu0 0.0
    %1911 = vmatpush1.msra.mxu0 %v412
    %1912 = vmatprep.subr.mxu0 0.0
    %1913 = vmatpush2.msra.mxu0 0.0
    %1914 = vmatprep.subr.mxu0 0.0
    %1915 = vmatpush2.msra.mxu0 0.0
    %1916 = vmatprep.subr.mxu0 0.0
    %1917 = vmatpush2.msra.mxu0 0.0
    %1918 = vmatprep.subr.mxu0 0.0
    %1919 = vmatpush2.msra.mxu0 0.0
    %1920 = vmatprep.subr.mxu0 0.0
    %1921 = vmatpush2.msra.mxu0 0.0
    %1922 = vmatprep.subr.mxu0 0.0
    %1923 = vmatpush2.msra.mxu0 0.0
    %1924 = vmatprep.subr.mxu0 0.0
    %1925 = vmatpush2.msra.mxu0 0.0
    %1926 = vmatprep.subr.mxu0 0.0
    %1927 = vmatpush2.msra.mxu0 0.0
    %1928 = vmatprep.subr.mxu0 0.0
    %1929 = vmatpush2.msra.mxu0 0.0
    %1930 = vmatprep.subr.mxu0 0.0
    %1931 = vmatpush2.msra.mxu0 0.0
    %1932 = vmatprep.subr.mxu0 0.0
    %1933 = vmatpush2.msra.mxu0 0.0
    %1934 = vmatprep.subr.mxu0 0.0
    %1935 = vmatpush2.msra.mxu0 0.0
    %1936 = vmatprep.subr.mxu0 0.0
    %1937 = vmatpush2.msra.mxu0 0.0
    %1938 = vmatprep.subr.mxu0 0.0
    %1939 = vmatpush2.msra.mxu0 0.0
    %1940 = vmatprep.subr.mxu0 0.0
    %1941 = vmatpush2.msra.mxu0 0.0
    %1942 = vmatprep.subr.mxu0 0.0
    %1943 = vmatpush2.msra.mxu0 0.0
    %1944 = vmatprep.mubr.f32.mxu0 0.0
    %1945 = vmatmul.mubr.f32.gmra.mxu0 %v1875
    %v1946 = vpop.f32.mrf.mxu0
    %v1947 = vadd.f32 0.0, %v1946
    %v1948 = vpop.f32.mrf.mxu0
    %1949 = vmatprep.mubr.f32.mxu0 0.0
    %1950 = vmatmul.mubr.f32.gmra.mxu0 %v1878
    %v1951 = vpop.f32.mrf.mxu0
    %v1952 = vadd.f32 0.0, %v1951
    %v1953 = vpop.f32.mrf.mxu0
    %1954 = vdwg.mxu0
    %v1955 = vadd.f32 %v1872, %v1947
    %v1956 = vadd.f32 %v1873, %v1952
    %v1957 = vmul.f32 %v1866, 0.7
    %v1958 = vmul.f32 %v1867, 0.7
    %v1959 = vtanh.pop %v1955
    %v1960 = vtanh.pop %v1956
    %v1961 = vmul.f32 %v1959, 0.3
    %v1962 = vmul.f32 %v1960, 0.3
    %v1963 = vadd.f32 %v1957, %v1961
    %v1964 = vadd.f32 %v1958, %v1962
    %s1965 = scalar_lea.vmem %s4, 240
    %1966 = vst.msk [vmem:[%s1965] sm:$0xff] %vm379, %v1963
    %1967 = vst.msk [vmem:[%s1965 + $0x8] sm:$0xff] %vm379, %v1964
    %1968 = vst.msk [vmem:[#allocation3] sm:$0xff] %vm379, %v1963
    %1969 = vst.msk [vmem:[#allocation3 + $0x8] sm:$0xff] %vm379, %v1964
    // Predicated region
    $region18: #{_esn_sequence_impl.1} parent=1 // pred_check
      _
    $region19: #{_esn_sequence_impl.1} parent=1 // pred_check_branch
      %1971 = sbr.rel (0) target = $region21
    $region20: #{_esn_sequence_impl.1} parent=1 // pred_region
      _
    $region21: #{_esn_sequence_impl.1} parent=1 // pred_fallthru
      _
    // Predicated region
    $region22: #{_esn_sequence_impl.1} parent=1 // pred_check
      _
    $region23: #{_esn_sequence_impl.1} parent=1 // pred_check_branch
      %1973 = sbr.rel (0) target = $region25
    $region24: #{_esn_sequence_impl.1} parent=1 // pred_region
      %s1975 = ssub.s32 256, 256
      %1976 = vsyncadd [#allocation4], %s1975
      %s1977 = sshll.u32 [#allocation3], 4
      %s1978 = int_to_ptr.vmem [resolvable:$true] %s1977
      %1983 = dma.vmem_to_hbm [thread:$0]  %s1978, 256, %s5, [#allocation4], 128, 128, 8
    $region25: #{_esn_sequence_impl.1} parent=1 // pred_fallthru
      _
    // Predicated region
    $region26: #{_esn_sequence_impl.1} parent=1 // pred_check
      _
    $region27: #{_esn_sequence_impl.1} parent=1 // pred_check_branch
      %1985 = sbr.rel (0) target = $region29
    $region28: #{_esn_sequence_impl.1} parent=1 // pred_region
      _
    $region29: #{_esn_sequence_impl.1} parent=1 // pred_fallthru
      _
    // Predicated region
    $region30: #{_esn_sequence_impl.1} parent=1 // pred_check
      _
    $region31: #{_esn_sequence_impl.1} parent=1 // pred_check_branch
      %1987 = sbr.rel (0) target = $region33
    $region32: #{_esn_sequence_impl.1} parent=1 // pred_region
      %1988 = dma.done [#allocation4], 256
    $region33: #{_esn_sequence_impl.1} parent=1 // pred_fallthru
      _
    %1989 = vsyncpa [#allocation4], 1

</llo_original>
